<compile_context>
chip_gen: v7x
topology: tpu7x:2x2x1
jax: 0.10.0
libtpu: 0.0.40
codegen_flags: <defaults>
</compile_context>

<pallas_src>
import jax
import jax.numpy as jnp
from jax.experimental import pallas as pl
from jax.experimental.pallas import tpu as pltpu

# ---------------- synthetic Config (small, deterministic) ----------------
VOCAB = 64          # word-embedding vocab of the BERT stand-in
HIDDEN = 32         # bert_config.hidden_size == Config.embed_size
CLASS_NUMS = 8      # Config.class_nums
PROMPT_LEN = 4      # Config.prompt_length
SEQ_LEN = 5         # number of per-token prompts per sequence (Viterbi length)
TOK_LEN = 16        # tokens per prompt sentence
T_ID = 61           # tokenizer id of '[T]'
PLB_ID = 62         # tokenizer id of '[PLB]'

assert CLASS_NUMS + 1 <= VOCAB  # cur_pred (argmax+1) is written back as a token id

_VMEM = pl.BlockSpec(memory_space=pltpu.MemorySpace.VMEM)


# ============================ Pallas kernels ============================

def _mlp_kernel(x_ref, w1_ref, b1_ref, w2_ref, b2_ref, o_ref):
    # prompt encoder (Config.prompt_encoder_type == 'mlp'): Linear -> ReLU -> Linear
    h = jnp.dot(x_ref[...], w1_ref[...], preferred_element_type=jnp.float32) + b1_ref[...]
    h = jnp.maximum(h, 0.0)
    o_ref[...] = jnp.dot(h, w2_ref[...], preferred_element_type=jnp.float32) + b2_ref[...]


def _seq_viterbi_kernel(emb_ref, mask_ref, plb_ref, ptab_ref, w_ref, b_ref, trans_ref,
                        trellis_ref, bp_ref, scores_sc, onehot_sc):
    # One grid step = one prompt sentence of one sequence.
    #   emb_ref  : (L, H) word embeddings with '[T]' already replaced (precomputed)
    #   mask_ref : (1, L) attention mask row
    #   plb_ref  : (L, 1) 1.0 where the token is '[PLB]'
    #   ptab_ref : (C, H) word embeddings of token ids 1..C (possible cur_pred ids)
    #   w/b      : classifier Linear(H -> C)
    #   trans    : (C, C) transition params
    # scratch (carried across the sequential s axis):
    #   scores_sc : (1, C) current Viterbi scores row
    #   onehot_sc : (1, C) one-hot of argmax(scores) from the PREVIOUS sentence
    s = pl.program_id(1)
    C = trans_ref.shape[0]
    lane_ids = jax.lax.broadcasted_iota(jnp.int32, (1, C), 1)

    @pl.when(s == 0)
    def _():
        # never consumed at s == 0 (gated below) but avoid reading uninitialized VMEM
        onehot_sc[...] = jnp.zeros_like(onehot_sc)

    # '[PLB]' substitution: at step s>0 replace the '[PLB]' token embedding with the
    # word embedding of token id (prev argmax + 1)  == onehot @ word_emb[1:C+1].
    pred_emb = jnp.dot(onehot_sc[...], ptab_ref[...],
                       preferred_element_type=jnp.float32)                  # (1, H)
    sub = jnp.logical_and(plb_ref[...] > 0.5, s > 0)                        # (L, 1)
    emb = jnp.where(sub, pred_emb, emb_ref[...])                            # (L, H)

    # TODO(synk): the pretrained BERT encoder + prefix past_key_values has no
    # self-contained Pallas equivalent; pooled_output is stood-in by attention-masked
    # mean pooling.  Dropout is identity (eval mode).
    mask = mask_ref[...]                                                    # (1, L)
    denom = jnp.maximum(jnp.sum(mask, axis=1, keepdims=True), 1.0)
    pooled = jnp.dot(mask, emb, preferred_element_type=jnp.float32) / denom # (1, H)
    logits = jnp.dot(pooled, w_ref[...],
                     preferred_element_type=jnp.float32) + b_ref[...]       # (1, C)

    @pl.when(s == 0)
    def _():
        scores_sc[...] = logits
        bp_ref[...] = lane_ids          # == `labels` row in the reference (unused by backtrace)

    @pl.when(s > 0)
    def _():
        rid = jax.lax.broadcasted_iota(jnp.int32, (C, C), 0)
        cid = jax.lax.broadcasted_iota(jnp.int32, (C, C), 1)
        eye = rid == cid
        # row -> column relayout via identity mask + lane reduction (no transpose op)
        scores_col = jnp.sum(jnp.where(eye, scores_sc[...], 0.0),
                             axis=1, keepdims=True)                          # (C, 1)
        # M[i, j] = scores[i] + trans[i, j] + observe[j]
        M = scores_col + trans_ref[...] + logits                             # (C, C)
        mx = jnp.max(M, axis=0, keepdims=True)                               # (1, C)
        # argmax over axis 0 (first occurrence on ties)
        bp = jnp.min(jnp.where(M == mx, rid, C), axis=0, keepdims=True)      # (1, C) i32
        scores_sc[...] = mx
        bp_ref[...] = bp

    # F.softmax(trellis) row (dim=1) — written directly; argmax is softmax-invariant
    row = scores_sc[...]
    rmax = jnp.max(row, axis=1, keepdims=True)
    e = jnp.exp(row - rmax)
    trellis_ref[...] = e / jnp.sum(e, axis=1, keepdims=True)

    # one-hot of argmax(scores): token id (argmax+1) fills the next sentence's '[PLB]'
    cand = jnp.where(row == rmax, lane_ids, C)
    amin = jnp.min(cand, axis=1, keepdims=True)                              # (1, 1)
    onehot_sc[...] = (lane_ids == amin).astype(jnp.float32)


# ============================ Pallas wrappers ============================

def mlp_encode(x, w1, b1, w2, b2):
    return pl.pallas_call(
        _mlp_kernel,
        out_shape=jax.ShapeDtypeStruct(x.shape, jnp.float32),
        in_specs=[_VMEM] * 5,
        out_specs=_VMEM,
    )(x, w1, b1, w2, b2)


def fused_seq_viterbi(base_emb, mask4, plb_mask, pred_table, cls_w, cls_b, trans):
    B, S, L, H = base_emb.shape
    C = trans.shape[0]
    return pl.pallas_call(
        _seq_viterbi_kernel,
        out_shape=(jax.ShapeDtypeStruct((B, S, 1, C), jnp.float32),   # softmaxed trellis
                   jax.ShapeDtypeStruct((B, S, 1, C), jnp.int32)),    # backpointers
        grid_spec=pltpu.PrefetchScalarGridSpec(
            num_scalar_prefetch=0,
            grid=(B, S),
            in_specs=[
                pl.BlockSpec((None, None, L, H), lambda b, s: (b, s, 0, 0)),
                pl.BlockSpec((None, None, 1, L), lambda b, s: (b, s, 0, 0)),
                pl.BlockSpec((None, None, L, 1), lambda b, s: (b, s, 0, 0)),
                pl.BlockSpec((C, H), lambda b, s: (0, 0)),
                pl.BlockSpec((H, C), lambda b, s: (0, 0)),
                pl.BlockSpec((1, C), lambda b, s: (0, 0)),
                pl.BlockSpec((C, C), lambda b, s: (0, 0)),
            ],
            out_specs=(
                pl.BlockSpec((None, None, 1, C), lambda b, s: (b, s, 0, 0)),
                pl.BlockSpec((None, None, 1, C), lambda b, s: (b, s, 0, 0)),
            ),
            scratch_shapes=[pltpu.VMEM((1, C), jnp.float32),    # Viterbi scores row
                            pltpu.VMEM((1, C), jnp.float32)],   # prev-step argmax one-hot
        ),
        compiler_params=pltpu.CompilerParams(
            dimension_semantics=("parallel", "arbitrary")),     # batch || , sequence serial
    )(base_emb, mask4, plb_mask, pred_table, cls_w, cls_b, trans)


# ============================ model (glue, jitted) ============================

def init_params(key):
    ks = jax.random.split(key, 8)
    p = {
        'word_emb':   jax.random.normal(ks[0], (VOCAB, HIDDEN), jnp.float32) * 0.02,
        'prompt_emb': jax.random.normal(ks[1], (PROMPT_LEN, HIDDEN), jnp.float32) * 0.02,
        'mlp_w1':     jax.random.normal(ks[2], (HIDDEN, HIDDEN), jnp.float32) * 0.05,
        'mlp_b1':     jnp.zeros((1, HIDDEN), jnp.float32),
        'mlp_w2':     jax.random.normal(ks[3], (HIDDEN, HIDDEN), jnp.float32) * 0.05,
        'mlp_b2':     jnp.zeros((1, HIDDEN), jnp.float32),
        'cls_w':      jax.random.normal(ks[4], (HIDDEN, CLASS_NUMS), jnp.float32) * 0.05,
        'cls_b':      jnp.zeros((1, CLASS_NUMS), jnp.float32),
        'trans':      jax.random.normal(ks[5], (CLASS_NUMS, CLASS_NUMS), jnp.float32),
    }
    # TODO(synk): self.fc, prefix_encoder / get_prompt (past_key_values) and
    # BertOnlyMLMHead are never consumed by forward()'s viterbi path -> not materialized.
    return p


@jax.jit
def forward_core(input_ids, attention_mask, params):
    """input_ids/attention_mask: (B, SEQ_LEN, TOK_LEN) int32."""
    B, S, L = input_ids.shape
    C = params['trans'].shape[0]

    # (1) hoisted prompt-encoder MLP: loop-invariant, computed ONCE per forward
    replace = mlp_encode(params['prompt_emb'], params['mlp_w1'], params['mlp_b1'],
                         params['mlp_w2'], params['mlp_b2'])                 # (P, H)

    # (2) precompute word embeddings with the k-th '[T]' replaced by the k-th prompt
    #     embedding (pure gather glue; '[PLB]' substitution is data-dependent and is
    #     done inside the fused kernel).
    raw = jnp.take(params['word_emb'], input_ids, axis=0)                    # (B,S,L,H)
    t_mask = input_ids == T_ID
    t_rank = jnp.clip(jnp.cumsum(t_mask.astype(jnp.int32), axis=-1) - 1,
                      0, PROMPT_LEN - 1)
    base_emb = jnp.where(t_mask[..., None], jnp.take(replace, t_rank, axis=0), raw)

    plb_mask = (input_ids == PLB_ID).astype(jnp.float32)[..., None]          # (B,S,L,1)
    mask4 = attention_mask.astype(jnp.float32)[:, :, None, :]                # (B,S,1,L)
    pred_table = params['word_emb'][1:1 + C]                                 # (C,H)

    # (3) ONE fused kernel: emission + Viterbi recurrence + trellis softmax
    soft_trellis, bp = fused_seq_viterbi(base_emb, mask4, plb_mask, pred_table,
                                         params['cls_w'], params['cls_b'],
                                         params['trans'])
    soft_trellis = soft_trellis[:, :, 0, :]                                  # (B,S,C)
    bp = bp[:, :, 0, :]                                                      # (B,S,C)

    # (4) path backtrace on the (S, C) backpointer array (tiny static loop in glue)
    last = jnp.argmax(soft_trellis[:, -1, :], axis=-1).astype(jnp.int32)     # (B,)
    cols = [None] * S
    cols[S - 1] = last
    for s in range(S - 1, 0, -1):
        cols[s - 1] = jnp.take_along_axis(bp[:, s, :], cols[s][:, None], axis=1)[:, 0]
    best_paths = jnp.stack(cols, axis=1).astype(jnp.int32)                   # (B,S)

    # get_score()'s non-MLM path returns loss 0 -> averaged loss is 0
    loss = jnp.float32(0.0)
    return soft_trellis, best_paths, loss


def forward(datas, params):
    input_ids = jnp.stack([d['input_ids'] for d in datas])                   # (B,S,L)
    attention_mask = jnp.stack([d['attention_mask'] for d in datas])         # (B,S,L)
    soft_trellis, best_paths, loss = forward_core(input_ids, attention_mask, params)
    total_predict_labels = [best_paths[i] for i in range(len(datas))]
    total_scores = [soft_trellis[i] for i in range(len(datas))]
    return total_predict_labels, total_scores, loss


# ============================ demo ============================

if __name__ == "__main__":
    key = jax.random.PRNGKey(0)
    pkey, dkey = jax.random.split(key)
    params = init_params(pkey)

    datas = []
    for _ in range(2):
        dkey, k1 = jax.random.split(dkey)
        ids = jax.random.randint(k1, (SEQ_LEN, TOK_LEN), 0, VOCAB - 4, dtype=jnp.int32)
        ids = ids.at[:, 1:1 + PROMPT_LEN].set(T_ID)   # prompt '[T]' tokens
        ids = ids.at[:, 10].set(PLB_ID)               # '[PLB]' placeholder per sentence
        mask = jnp.ones((SEQ_LEN, TOK_LEN), jnp.int32)
        datas.append({'input_ids': ids, 'attention_mask': mask})

    preds, scores, loss = forward(datas, params)
    jax.block_until_ready(scores)
    jax.block_until_ready(preds)
    print("KERNEL_OK")
</pallas_src>

<mosaic_0001>
module attributes {stable_mosaic.version = 11 : i64} {
  func.func @_mlp_kernel(%arg0: memref<4x32xf32, #tpu.memory_space<vmem>>, %arg1: memref<32x32xf32, #tpu.memory_space<vmem>>, %arg2: memref<1x32xf32, #tpu.memory_space<vmem>>, %arg3: memref<32x32xf32, #tpu.memory_space<vmem>>, %arg4: memref<1x32xf32, #tpu.memory_space<vmem>>, %arg5: memref<4x32xf32, #tpu.memory_space<vmem>>) attributes {dimension_semantics = [], scalar_prefetch = 0 : i64, scratch_operands = 0 : i64, tpu.core_type = #tpu.core_type<tc>} {
    %c0 = arith.constant 0 : index
    %c0_0 = arith.constant 0 : index
    %0 = vector.load %arg0[%c0, %c0_0] : memref<4x32xf32, #tpu.memory_space<vmem>>, vector<4x32xf32>
    %c0_1 = arith.constant 0 : index
    %c0_2 = arith.constant 0 : index
    %1 = vector.load %arg1[%c0_1, %c0_2] : memref<32x32xf32, #tpu.memory_space<vmem>>, vector<32x32xf32>
    %cst = arith.constant dense<0.000000e+00> : vector<4x32xf32>
    %2 = tpu.matmul %0, %1, %cst {dimension_numbers = #tpu.dot_dimension_numbers<[1], [0], [0], [1], [0, 0, 1, 1], [], []>} : vector<4x32xf32>, vector<32x32xf32>, vector<4x32xf32> -> vector<4x32xf32>
    %c0_3 = arith.constant 0 : index
    %c0_4 = arith.constant 0 : index
    %3 = vector.load %arg2[%c0_3, %c0_4] : memref<1x32xf32, #tpu.memory_space<vmem>>, vector<1x32xf32>
    %4 = vector.broadcast %3 : vector<1x32xf32> to vector<4x32xf32>
    %5 = arith.addf %2, %4 : vector<4x32xf32>
    %cst_5 = arith.constant 0.000000e+00 : f32
    %6 = vector.broadcast %cst_5 : f32 to vector<4x32xf32>
    %7 = arith.maximumf %5, %6 : vector<4x32xf32>
    %c0_6 = arith.constant 0 : index
    %c0_7 = arith.constant 0 : index
    %8 = vector.load %arg3[%c0_6, %c0_7] : memref<32x32xf32, #tpu.memory_space<vmem>>, vector<32x32xf32>
    %cst_8 = arith.constant dense<0.000000e+00> : vector<4x32xf32>
    %9 = tpu.matmul %7, %8, %cst_8 {dimension_numbers = #tpu.dot_dimension_numbers<[1], [0], [0], [1], [0, 0, 1, 1], [], []>} : vector<4x32xf32>, vector<32x32xf32>, vector<4x32xf32> -> vector<4x32xf32>
    %c0_9 = arith.constant 0 : index
    %c0_10 = arith.constant 0 : index
    %10 = vector.load %arg4[%c0_9, %c0_10] : memref<1x32xf32, #tpu.memory_space<vmem>>, vector<1x32xf32>
    %11 = vector.broadcast %10 : vector<1x32xf32> to vector<4x32xf32>
    %12 = arith.addf %9, %11 : vector<4x32xf32>
    %c0_11 = arith.constant 0 : index
    %c0_12 = arith.constant 0 : index
    %13 = vector.load %arg5[%c0_11, %c0_12] : memref<4x32xf32, #tpu.memory_space<vmem>>, vector<4x32xf32>
    tpu.vector_store %arg5[%c0_11, %c0_12], %12 {strides = array<i32>} : memref<4x32xf32, #tpu.memory_space<vmem>>, vector<4x32xf32>,
    return
  }
}

module attributes {stable_mosaic.version = 11 : i64} {
  func.func @_seq_viterbi_kernel(%arg0: i32, %arg1: i32, %arg2: memref<1x1x16x32xf32, #tpu.memory_space<vmem>>, %arg3: memref<1x1x1x16xf32, #tpu.memory_space<vmem>>, %arg4: memref<1x1x16x1xf32, #tpu.memory_space<vmem>>, %arg5: memref<8x32xf32, #tpu.memory_space<vmem>>, %arg6: memref<32x8xf32, #tpu.memory_space<vmem>>, %arg7: memref<1x8xf32, #tpu.memory_space<vmem>>, %arg8: memref<8x8xf32, #tpu.memory_space<vmem>>, %arg9: memref<1x1x1x8xf32, #tpu.memory_space<vmem>>, %arg10: memref<1x1x1x8xi32, #tpu.memory_space<vmem>>, %arg11: memref<1x8xf32, #tpu.memory_space<vmem>>, %arg12: memref<1x8xf32, #tpu.memory_space<vmem>>) attributes {dimension_semantics = [#tpu.dimension_semantics<parallel>, #tpu.dimension_semantics<arbitrary>], iteration_bounds = array<i64: 2, 5>, scalar_prefetch = 0 : i64, scratch_operands = 2 : i64, tpu.core_type = #tpu.core_type<tc>, window_params = [{transform_indices = @transform_0, window_bounds = array<i64: 1, 1, 16, 32>}, {transform_indices = @transform_1, window_bounds = array<i64: 1, 1, 1, 16>}, {transform_indices = @transform_2, window_bounds = array<i64: 1, 1, 16, 1>}, {pipeline_mode = #tpu.pipeline_mode<synchronous>, transform_indices = @transform_3, window_bounds = array<i64: 8, 32>}, {pipeline_mode = #tpu.pipeline_mode<synchronous>, transform_indices = @transform_4, window_bounds = array<i64: 32, 8>}, {pipeline_mode = #tpu.pipeline_mode<synchronous>, transform_indices = @transform_5, window_bounds = array<i64: 1, 8>}, {pipeline_mode = #tpu.pipeline_mode<synchronous>, transform_indices = @transform_6, window_bounds = array<i64: 8, 8>}, {transform_indices = @transform_7, window_bounds = array<i64: 1, 1, 1, 8>}, {transform_indices = @transform_8, window_bounds = array<i64: 1, 1, 1, 8>}]} {
    %0 = tpu.iota {dimensions = array<i32: 1>} : vector<1x8xi32>
    %c0_i32 = arith.constant 0 : i32
    %1 = arith.cmpi eq, %arg1, %c0_i32 : i32
    %2 = arith.extui %1 : i1 to i32
    %c0_i32_0 = arith.constant 0 : i32
    %3 = arith.cmpi ne, %2, %c0_i32_0 : i32
    scf.if %3 {
      %cst_41 = arith.constant 0.000000e+00 : f32
      %64 = vector.broadcast %cst_41 : f32 to vector<1x8xf32>
      %c0_42 = arith.constant 0 : index
      %c0_43 = arith.constant 0 : index
      %65 = vector.load %arg12[%c0_42, %c0_43] : memref<1x8xf32, #tpu.memory_space<vmem>>, vector<1x8xf32>
      tpu.vector_store %arg12[%c0_42, %c0_43], %64 {strides = array<i32>} : memref<1x8xf32, #tpu.memory_space<vmem>>, vector<1x8xf32>,
    } else {
    }
    %c0 = arith.constant 0 : index
    %c0_1 = arith.constant 0 : index
    %4 = vector.load %arg12[%c0, %c0_1] : memref<1x8xf32, #tpu.memory_space<vmem>>, vector<1x8xf32>
    %c0_2 = arith.constant 0 : index
    %c0_3 = arith.constant 0 : index
    %5 = vector.load %arg5[%c0_2, %c0_3] : memref<8x32xf32, #tpu.memory_space<vmem>>, vector<8x32xf32>
    %cst = arith.constant dense<0.000000e+00> : vector<1x32xf32>
    %6 = tpu.matmul %4, %5, %cst {dimension_numbers = #tpu.dot_dimension_numbers<[1], [0], [0], [1], [0, 0, 1, 1], [], []>} : vector<1x8xf32>, vector<8x32xf32>, vector<1x32xf32> -> vector<1x32xf32>
    %c0_4 = arith.constant 0 : index
    %c0_5 = arith.constant 0 : index
    %c0_6 = arith.constant 0 : index
    %c0_7 = arith.constant 0 : index
    %7 = vector.load %arg4[%c0_4, %c0_5, %c0_6, %c0_7] : memref<1x1x16x1xf32, #tpu.memory_space<vmem>>, vector<1x1x16x1xf32>
    %8 = vector.shape_cast %7 : vector<1x1x16x1xf32> to vector<16x1xf32>
    %cst_8 = arith.constant 5.000000e-01 : f32
    %9 = vector.broadcast %cst_8 : f32 to vector<16x1xf32>
    %10 = arith.cmpf ogt, %8, %9 : vector<16x1xf32>
    %c0_i32_9 = arith.constant 0 : i32
    %11 = arith.cmpi sgt, %arg1, %c0_i32_9 : i32
    %12 = vector.broadcast %11 : i1 to vector<16x1xi1>
    %13 = arith.andi %10, %12 : vector<16x1xi1>
    %c0_10 = arith.constant 0 : index
    %c0_11 = arith.constant 0 : index
    %c0_12 = arith.constant 0 : index
    %c0_13 = arith.constant 0 : index
    %14 = vector.load %arg2[%c0_10, %c0_11, %c0_12, %c0_13] : memref<1x1x16x32xf32, #tpu.memory_space<vmem>>, vector<1x1x16x32xf32>
    %15 = vector.shape_cast %14 : vector<1x1x16x32xf32> to vector<16x32xf32>
    %16 = vector.shape_cast %13 : vector<16x1xi1> to vector<16x1xi1>
    %17 = vector.broadcast %16 : vector<16x1xi1> to vector<16x32xi1>
    %18 = vector.shape_cast %6 : vector<1x32xf32> to vector<1x32xf32>
    %19 = vector.broadcast %18 : vector<1x32xf32> to vector<16x32xf32>
    %20 = arith.select %17, %19, %15 : vector<16x32xi1>, vector<16x32xf32>
    %c0_14 = arith.constant 0 : index
    %c0_15 = arith.constant 0 : index
    %c0_16 = arith.constant 0 : index
    %c0_17 = arith.constant 0 : index
    %21 = vector.load %arg3[%c0_14, %c0_15, %c0_16, %c0_17] : memref<1x1x1x16xf32, #tpu.memory_space<vmem>>, vector<1x1x1x16xf32>
    %22 = vector.shape_cast %21 : vector<1x1x1x16xf32> to vector<1x16xf32>
    %cst_18 = arith.constant dense<0.000000e+00> : vector<1xf32>
    %23 = vector.multi_reduction <add>, %22, %cst_18 [1] : vector<1x16xf32> to vector<1xf32>
    %24 = vector.shape_cast %23 : vector<1xf32> to vector<1x1xf32>
    %cst_19 = arith.constant 1.000000e+00 : f32
    %25 = vector.broadcast %cst_19 : f32 to vector<1x1xf32>
    %26 = arith.maximumf %24, %25 : vector<1x1xf32>
    %cst_20 = arith.constant dense<0.000000e+00> : vector<1x32xf32>
    %27 = tpu.matmul %22, %20, %cst_20 {dimension_numbers = #tpu.dot_dimension_numbers<[1], [0], [0], [1], [0, 0, 1, 1], [], []>} : vector<1x16xf32>, vector<16x32xf32>, vector<1x32xf32> -> vector<1x32xf32>
    %28 = vector.broadcast %26 : vector<1x1xf32> to vector<1x32xf32>
    %29 = arith.divf %27, %28 : vector<1x32xf32>
    %c0_21 = arith.constant 0 : index
    %c0_22 = arith.constant 0 : index
    %30 = vector.load %arg6[%c0_21, %c0_22] : memref<32x8xf32, #tpu.memory_space<vmem>>, vector<32x8xf32>
    %cst_23 = arith.constant dense<0.000000e+00> : vector<1x8xf32>
    %31 = tpu.matmul %29, %30, %cst_23 {dimension_numbers = #tpu.dot_dimension_numbers<[1], [0], [0], [1], [0, 0, 1, 1], [], []>} : vector<1x32xf32>, vector<32x8xf32>, vector<1x8xf32> -> vector<1x8xf32>
    %c0_24 = arith.constant 0 : index
    %c0_25 = arith.constant 0 : index
    %32 = vector.load %arg7[%c0_24, %c0_25] : memref<1x8xf32, #tpu.memory_space<vmem>>, vector<1x8xf32>
    %33 = arith.addf %31, %32 : vector<1x8xf32>
    %c0_i32_26 = arith.constant 0 : i32
    %34 = arith.cmpi eq, %arg1, %c0_i32_26 : i32
    %35 = arith.extui %34 : i1 to i32
    %c0_i32_27 = arith.constant 0 : i32
    %36 = arith.cmpi ne, %35, %c0_i32_27 : i32
    scf.if %36 {
      %c0_41 = arith.constant 0 : index
      %c0_42 = arith.constant 0 : index
      %64 = vector.load %arg11[%c0_41, %c0_42] : memref<1x8xf32, #tpu.memory_space<vmem>>, vector<1x8xf32>
      tpu.vector_store %arg11[%c0_41, %c0_42], %33 {strides = array<i32>} : memref<1x8xf32, #tpu.memory_space<vmem>>, vector<1x8xf32>,
      %c0_43 = arith.constant 0 : index
      %c0_44 = arith.constant 0 : index
      %c0_45 = arith.constant 0 : index
      %c0_46 = arith.constant 0 : index
      %65 = vector.load %arg10[%c0_43, %c0_44, %c0_45, %c0_46] : memref<1x1x1x8xi32, #tpu.memory_space<vmem>>, vector<1x1x1x8xi32>
      %66 = vector.shape_cast %65 : vector<1x1x1x8xi32> to vector<1x8xi32>
      %67 = vector.shape_cast %0 : vector<1x8xi32> to vector<1x1x1x8xi32>
      tpu.vector_store %arg10[%c0_43, %c0_44, %c0_45, %c0_46], %67 {strides = array<i32>} : memref<1x1x1x8xi32, #tpu.memory_space<vmem>>, vector<1x1x1x8xi32>,
    } else {
    }
    %c0_i32_28 = arith.constant 0 : i32
    %37 = arith.cmpi sgt, %arg1, %c0_i32_28 : i32
    %38 = arith.extui %37 : i1 to i32
    %c0_i32_29 = arith.constant 0 : i32
    %39 = arith.cmpi ne, %38, %c0_i32_29 : i32
    scf.if %39 {
      %64 = tpu.iota {dimensions = array<i32: 0>} : vector<8x8xi32>
      %65 = tpu.iota {dimensions = array<i32: 1>} : vector<8x8xi32>
      %66 = arith.cmpi eq, %64, %65 : vector<8x8xi32>
      %c0_41 = arith.constant 0 : index
      %c0_42 = arith.constant 0 : index
      %67 = vector.load %arg11[%c0_41, %c0_42] : memref<1x8xf32, #tpu.memory_space<vmem>>, vector<1x8xf32>
      %cst_43 = arith.constant 0.000000e+00 : f32
      %68 = vector.shape_cast %67 : vector<1x8xf32> to vector<1x8xf32>
      %69 = vector.broadcast %68 : vector<1x8xf32> to vector<8x8xf32>
      %70 = vector.broadcast %cst_43 : f32 to vector<8x8xf32>
      %71 = arith.select %66, %69, %70 : vector<8x8xi1>, vector<8x8xf32>
      %cst_44 = arith.constant dense<0.000000e+00> : vector<8xf32>
      %72 = vector.multi_reduction <add>, %71, %cst_44 [1] : vector<8x8xf32> to vector<8xf32>
      %73 = vector.shape_cast %72 : vector<8xf32> to vector<8x1xf32>
      %c0_45 = arith.constant 0 : index
      %c0_46 = arith.constant 0 : index
      %74 = vector.load %arg8[%c0_45, %c0_46] : memref<8x8xf32, #tpu.memory_space<vmem>>, vector<8x8xf32>
      %75 = vector.broadcast %73 : vector<8x1xf32> to vector<8x8xf32>
      %76 = arith.addf %75, %74 : vector<8x8xf32>
      %77 = vector.broadcast %33 : vector<1x8xf32> to vector<8x8xf32>
      %78 = arith.addf %76, %77 : vector<8x8xf32>
      %cst_47 = arith.constant dense<0xFF800000> : vector<8xf32>
      %79 = vector.multi_reduction <maximumf>, %78, %cst_47 [0] : vector<8x8xf32> to vector<8xf32>
      %80 = vector.shape_cast %79 : vector<8xf32> to vector<1x8xf32>
      %81 = vector.broadcast %80 : vector<1x8xf32> to vector<8x8xf32>
      %82 = arith.cmpf oeq, %78, %81 : vector<8x8xf32>
      %c8_i32_48 = arith.constant 8 : i32
      %83 = vector.broadcast %c8_i32_48 : i32 to vector<8x8xi32>
      %84 = arith.select %82, %64, %83 : vector<8x8xi1>, vector<8x8xi32>
      %cst_49 = arith.constant dense<2147483647> : vector<8xi32>
      %85 = vector.multi_reduction <minsi>, %84, %cst_49 [0] : vector<8x8xi32> to vector<8xi32>
      %86 = vector.shape_cast %85 : vector<8xi32> to vector<1x8xi32>
      %c0_50 = arith.constant 0 : index
      %c0_51 = arith.constant 0 : index
      %87 = vector.load %arg11[%c0_50, %c0_51] : memref<1x8xf32, #tpu.memory_space<vmem>>, vector<1x8xf32>
      tpu.vector_store %arg11[%c0_50, %c0_51], %80 {strides = array<i32>} : memref<1x8xf32, #tpu.memory_space<vmem>>, vector<1x8xf32>,
      %c0_52 = arith.constant 0 : index
      %c0_53 = arith.constant 0 : index
      %c0_54 = arith.constant 0 : index
      %c0_55 = arith.constant 0 : index
      %88 = vector.load %arg10[%c0_52, %c0_53, %c0_54, %c0_55] : memref<1x1x1x8xi32, #tpu.memory_space<vmem>>, vector<1x1x1x8xi32>
      %89 = vector.shape_cast %88 : vector<1x1x1x8xi32> to vector<1x8xi32>
      %90 = vector.shape_cast %86 : vector<1x8xi32> to vector<1x1x1x8xi32>
      tpu.vector_store %arg10[%c0_52, %c0_53, %c0_54, %c0_55], %90 {strides = array<i32>} : memref<1x1x1x8xi32, #tpu.memory_space<vmem>>, vector<1x1x1x8xi32>,
    } else {
    }
    %c0_30 = arith.constant 0 : index
    %c0_31 = arith.constant 0 : index
    %40 = vector.load %arg11[%c0_30, %c0_31] : memref<1x8xf32, #tpu.memory_space<vmem>>, vector<1x8xf32>
    %cst_32 = arith.constant dense<0xFF800000> : vector<1xf32>
    %41 = vector.multi_reduction <maximumf>, %40, %cst_32 [1] : vector<1x8xf32> to vector<1xf32>
    %42 = vector.shape_cast %41 : vector<1xf32> to vector<1x1xf32>
    %43 = vector.broadcast %42 : vector<1x1xf32> to vector<1x8xf32>
    %44 = arith.subf %40, %43 : vector<1x8xf32>
    %45 = math.exp %44 : vector<1x8xf32>
    %cst_33 = arith.constant dense<0.000000e+00> : vector<1xf32>
    %46 = vector.multi_reduction <add>, %45, %cst_33 [1] : vector<1x8xf32> to vector<1xf32>
    %47 = vector.shape_cast %46 : vector<1xf32> to vector<1x1xf32>
    %48 = vector.broadcast %47 : vector<1x1xf32> to vector<1x8xf32>
    %49 = arith.divf %45, %48 : vector<1x8xf32>
    %c0_34 = arith.constant 0 : index
    %c0_35 = arith.constant 0 : index
    %c0_36 = arith.constant 0 : index
    %c0_37 = arith.constant 0 : index
    %50 = vector.load %arg9[%c0_34, %c0_35, %c0_36, %c0_37] : memref<1x1x1x8xf32, #tpu.memory_space<vmem>>, vector<1x1x1x8xf32>
    %51 = vector.shape_cast %50 : vector<1x1x1x8xf32> to vector<1x8xf32>
    %52 = vector.shape_cast %49 : vector<1x8xf32> to vector<1x1x1x8xf32>
    tpu.vector_store %arg9[%c0_34, %c0_35, %c0_36, %c0_37], %52 {strides = array<i32>} : memref<1x1x1x8xf32, #tpu.memory_space<vmem>>, vector<1x1x1x8xf32>,
    %53 = vector.broadcast %42 : vector<1x1xf32> to vector<1x8xf32>
    %54 = arith.cmpf oeq, %40, %53 : vector<1x8xf32>
    %c8_i32 = arith.constant 8 : i32
    %55 = vector.broadcast %c8_i32 : i32 to vector<1x8xi32>
    %56 = arith.select %54, %0, %55 : vector<1x8xi1>, vector<1x8xi32>
    %cst_38 = arith.constant dense<2147483647> : vector<1xi32>
    %57 = vector.multi_reduction <minsi>, %56, %cst_38 [1] : vector<1x8xi32> to vector<1xi32>
    %58 = vector.shape_cast %57 : vector<1xi32> to vector<1x1xi32>
    %59 = vector.broadcast %58 : vector<1x1xi32> to vector<1x8xi32>
    %60 = arith.cmpi eq, %0, %59 : vector<1x8xi32>
    %61 = arith.extui %60 : vector<1x8xi1> to vector<1x8xi32>
    %62 = arith.sitofp %61 : vector<1x8xi32> to vector<1x8xf32>
    %c0_39 = arith.constant 0 : index
    %c0_40 = arith.constant 0 : index
    %63 = vector.load %arg12[%c0_39, %c0_40] : memref<1x8xf32, #tpu.memory_space<vmem>>, vector<1x8xf32>
    tpu.vector_store %arg12[%c0_39, %c0_40], %62 {strides = array<i32>} : memref<1x8xf32, #tpu.memory_space<vmem>>, vector<1x8xf32>,
    return
  }
  func.func @transform_0(%arg0: i32, %arg1: i32) -> (i32, i32, i32, i32) {
    %c0_i32 = arith.constant 0 : i32
    %c0_i32_0 = arith.constant 0 : i32
    %c0_i32_1 = arith.constant 0 : i32
    return %arg0, %arg1, %c0_i32, %c0_i32_0 : i32, i32, i32, i32
  }
  func.func @transform_1(%arg0: i32, %arg1: i32) -> (i32, i32, i32, i32) {
    %c0_i32 = arith.constant 0 : i32
    %c0_i32_0 = arith.constant 0 : i32
    %c0_i32_1 = arith.constant 0 : i32
    return %arg0, %arg1, %c0_i32, %c0_i32_0 : i32, i32, i32, i32
  }
  func.func @transform_2(%arg0: i32, %arg1: i32) -> (i32, i32, i32, i32) {
    %c0_i32 = arith.constant 0 : i32
    %c0_i32_0 = arith.constant 0 : i32
    %c0_i32_1 = arith.constant 0 : i32
    return %arg0, %arg1, %c0_i32, %c0_i32_0 : i32, i32, i32, i32
  }
  func.func @transform_3(%arg0: i32, %arg1: i32) -> (i32, i32) {
    %c0_i32 = arith.constant 0 : i32
    %c0_i32_0 = arith.constant 0 : i32
    %c0_i32_1 = arith.constant 0 : i32
    return %c0_i32, %c0_i32_0 : i32, i32
  }
  func.func @transform_4(%arg0: i32, %arg1: i32) -> (i32, i32) {
    %c0_i32 = arith.constant 0 : i32
    %c0_i32_0 = arith.constant 0 : i32
    %c0_i32_1 = arith.constant 0 : i32
    return %c0_i32, %c0_i32_0 : i32, i32
  }
  func.func @transform_5(%arg0: i32, %arg1: i32) -> (i32, i32) {
    %c0_i32 = arith.constant 0 : i32
    %c0_i32_0 = arith.constant 0 : i32
    %c0_i32_1 = arith.constant 0 : i32
    return %c0_i32, %c0_i32_0 : i32, i32
  }
  func.func @transform_6(%arg0: i32, %arg1: i32) -> (i32, i32) {
    %c0_i32 = arith.constant 0 : i32
    %c0_i32_0 = arith.constant 0 : i32
    %c0_i32_1 = arith.constant 0 : i32
    return %c0_i32, %c0_i32_0 : i32, i32
  }
  func.func @transform_7(%arg0: i32, %arg1: i32) -> (i32, i32, i32, i32) {
    %c0_i32 = arith.constant 0 : i32
    %c0_i32_0 = arith.constant 0 : i32
    %c0_i32_1 = arith.constant 0 : i32
    return %arg0, %arg1, %c0_i32, %c0_i32_0 : i32, i32, i32, i32
  }
  func.func @transform_8(%arg0: i32, %arg1: i32) -> (i32, i32, i32, i32) {
    %c0_i32 = arith.constant 0 : i32
    %c0_i32_0 = arith.constant 0 : i32
    %c0_i32_1 = arith.constant 0 : i32
    return %arg0, %arg1, %c0_i32, %c0_i32_0 : i32, i32, i32, i32
  }
}

</mosaic_0001>

<llo_original>
// kernel: forward_core.2
$region0: #{forward_core.2}
  #allocation0 [shape = 'u32[]', space=smem, size = 0x4, offset = 0x4, fixed_abs, tag = 'smem constant byte address 0x4 - core index']
  #allocation1 [shape = 'u32[144,128]{1,0:T(1,128)}', space=vmem, size = 0x12000, scoped, tag = 'internal scratch']
  %s0 = inlined_call_operand.vmem [shape: f32[4,32], index: 0, kind: input, shape index: {}]
  %s1 = inlined_call_operand.hbm [shape: f32[32,32], index: 1, kind: input, shape index: {}]
  %s2 = inlined_call_operand.vmem [shape: f32[1,32], index: 2, kind: input, shape index: {}]
  %s3 = inlined_call_operand.hbm [shape: f32[32,32], index: 3, kind: input, shape index: {}]
  %s4 = inlined_call_operand.vmem [shape: f32[1,32], index: 4, kind: input, shape index: {}]
  %s5 = inlined_call_operand.vmem [shape: f32[4,32], index: 5, kind: output, shape index: {}]
  %s6 = sld [smem:[#allocation0]]
  $region38: #{forward_core.2} parent=0
    _
  %s8 = ssub.s32 1, %s6
  %s9 = scalar_select 0, %s8, %s6
  $region1: #{forward_core.2} parent=0
    #allocation2 [shape = 'u8[16384]{0}', space=vmem, size = 0x4000, scoped, tag = 'input window, operand 1, single buffered']
    #allocation3 [shape = 's32[1]{0}', space=sflag, size = 0x4, scoped, tag = 'scoped memory for forward_core.2']
    #allocation4 [shape = 'u8[16384]{0}', space=vmem, size = 0x4000, scoped, tag = 'input window, operand 3, single buffered']
    #allocation5 [shape = 's32[1]{0}', space=sflag, size = 0x4, scoped, tag = 'scoped memory for forward_core.2']
    %10 = vsyncpa [#allocation3], 0
    %11 = vsyncpa [#allocation5], 0
    // Predicated region
    $region2: #{forward_core.2} parent=1 // pred_check
      _
    $region3: #{forward_core.2} parent=1 // pred_check_branch
      %13 = sbr.rel (0) target = $region5
    $region4: #{forward_core.2} parent=1 // pred_region
      _
    $region5: #{forward_core.2} parent=1 // pred_fallthru
      _
    // Predicated region
    $region6: #{forward_core.2} parent=1 // pred_check
      _
    $region7: #{forward_core.2} parent=1 // pred_check_branch
      %15 = sbr.rel (0) target = $region9
    $region8: #{forward_core.2} parent=1 // pred_region
      %s17 = ssub.s32 512, 512
      %18 = vsyncadd [#allocation3], %s17
      %s19 = sshll.u32 [#allocation2], 4
      %s20 = int_to_ptr.vmem [resolvable:$true] %s19
      %25 = dma.hbm_to_vmem [thread:$0]  %s1, 512, %s20, [#allocation3], 128, 128, 8
    $region9: #{forward_core.2} parent=1 // pred_fallthru
      _
    // Predicated region
    $region10: #{forward_core.2} parent=1 // pred_check
      _
    $region11: #{forward_core.2} parent=1 // pred_check_branch
      %27 = sbr.rel (0) target = $region13
    $region12: #{forward_core.2} parent=1 // pred_region
      _
    $region13: #{forward_core.2} parent=1 // pred_fallthru
      _
    // Predicated region
    $region14: #{forward_core.2} parent=1 // pred_check
      _
    $region15: #{forward_core.2} parent=1 // pred_check_branch
      %29 = sbr.rel (0) target = $region17
    $region16: #{forward_core.2} parent=1 // pred_region
      %s31 = ssub.s32 512, 512
      %32 = vsyncadd [#allocation5], %s31
      %s33 = sshll.u32 [#allocation4], 4
      %s34 = int_to_ptr.vmem [resolvable:$true] %s33
      %39 = dma.hbm_to_vmem [thread:$0]  %s3, 512, %s34, [#allocation5], 128, 128, 8
    $region17: #{forward_core.2} parent=1 // pred_fallthru
      _
    // Predicated region
    $region18: #{forward_core.2} parent=1 // pred_check
      _
    $region19: #{forward_core.2} parent=1 // pred_check_branch
      %41 = sbr.rel (0) target = $region21
    $region20: #{forward_core.2} parent=1 // pred_region
      _
    $region21: #{forward_core.2} parent=1 // pred_fallthru
      _
    // Predicated region
    $region22: #{forward_core.2} parent=1 // pred_check
      _
    $region23: #{forward_core.2} parent=1 // pred_check_branch
      %43 = sbr.rel (0) target = $region25
    $region24: #{forward_core.2} parent=1 // pred_region
      %44 = dma.done [#allocation3], 512
    $region25: #{forward_core.2} parent=1 // pred_fallthru
      _
    // Predicated region
    $region26: #{forward_core.2} parent=1 // pred_check
      _
    $region27: #{forward_core.2} parent=1 // pred_check_branch
      %46 = sbr.rel (0) target = $region29
    $region28: #{forward_core.2} parent=1 // pred_region
      %47 = dma.done [#allocation5], 512
    $region29: #{forward_core.2} parent=1 // pred_fallthru
      _
    %v48 = vld [vmem:[%s0] sm:$0xf]
    %v49 = vld [vmem:[#allocation2] sm:$0xff]
    %v50 = vld [vmem:[#allocation2 + $0x8] sm:$0xff]
    %v51 = vld [vmem:[#allocation2 + $0x10] sm:$0xff]
    %v52 = vld [vmem:[#allocation2 + $0x18] sm:$0xff]
    %v53 = vld [vmem:[%s2] sm:$0x1]
    %v55 = vlaneseq
    %v56 = vshrl.u32 %v55, 7
    %v57 = vsub.s32 0, %v56
    %v58 = vrot.slane %v53, %v57
    %vm60 = vcmask 261120
    %v62 = vsel %vm60, %v48, 0
    %64 = vmatprep.subr.mxu0 0.0
    %65 = vmatpush1.msra.mxu0 %v49
    %66 = vmatprep.subr.mxu0 0.0
    %67 = vmatpush1.msra.mxu0 %v50
    %68 = vmatprep.subr.mxu0 0.0
    %69 = vmatpush1.msra.mxu0 %v51
    %70 = vmatprep.subr.mxu0 0.0
    %71 = vmatpush1.msra.mxu0 %v52
    %72 = vmatprep.subr.mxu0 0.0
    %73 = vmatpush1.msra.mxu0 0.0
    %74 = vmatprep.subr.mxu0 0.0
    %75 = vmatpush1.msra.mxu0 0.0
    %76 = vmatprep.subr.mxu0 0.0
    %77 = vmatpush1.msra.mxu0 0.0
    %78 = vmatprep.subr.mxu0 0.0
    %79 = vmatpush1.msra.mxu0 0.0
    %80 = vmatprep.subr.mxu0 0.0
    %81 = vmatpush1.msra.mxu0 0.0
    %82 = vmatprep.subr.mxu0 0.0
    %83 = vmatpush1.msra.mxu0 0.0
    %84 = vmatprep.subr.mxu0 0.0
    %85 = vmatpush1.msra.mxu0 0.0
    %86 = vmatprep.subr.mxu0 0.0
    %87 = vmatpush1.msra.mxu0 0.0
    %88 = vmatprep.subr.mxu0 0.0
    %89 = vmatpush1.msra.mxu0 0.0
    %90 = vmatprep.subr.mxu0 0.0
    %91 = vmatpush1.msra.mxu0 0.0
    %92 = vmatprep.subr.mxu0 0.0
    %93 = vmatpush1.msra.mxu0 0.0
    %94 = vmatprep.subr.mxu0 0.0
    %95 = vmatpush1.msra.mxu0 0.0
    %96 = vmatprep.subr.mxu0 0.0
    %97 = vmatpush1.msra.mxu0 0.0
    %98 = vmatprep.subr.mxu0 0.0
    %99 = vmatpush1.msra.mxu0 0.0
    %100 = vmatprep.subr.mxu0 0.0
    %101 = vmatpush1.msra.mxu0 0.0
    %102 = vmatprep.subr.mxu0 0.0
    %103 = vmatpush1.msra.mxu0 0.0
    %104 = vmatprep.subr.mxu0 0.0
    %105 = vmatpush1.msra.mxu0 0.0
    %106 = vmatprep.subr.mxu0 0.0
    %107 = vmatpush1.msra.mxu0 0.0
    %108 = vmatprep.subr.mxu0 0.0
    %109 = vmatpush1.msra.mxu0 0.0
    %110 = vmatprep.subr.mxu0 0.0
    %111 = vmatpush1.msra.mxu0 0.0
    %112 = vmatprep.subr.mxu0 0.0
    %113 = vmatpush1.msra.mxu0 0.0
    %114 = vmatprep.subr.mxu0 0.0
    %115 = vmatpush1.msra.mxu0 0.0
    %116 = vmatprep.subr.mxu0 0.0
    %117 = vmatpush1.msra.mxu0 0.0
    %118 = vmatprep.subr.mxu0 0.0
    %119 = vmatpush1.msra.mxu0 0.0
    %120 = vmatprep.subr.mxu0 0.0
    %121 = vmatpush1.msra.mxu0 0.0
    %122 = vmatprep.subr.mxu0 0.0
    %123 = vmatpush1.msra.mxu0 0.0
    %124 = vmatprep.subr.mxu0 0.0
    %125 = vmatpush1.msra.mxu0 0.0
    %126 = vmatprep.subr.mxu0 0.0
    %127 = vmatpush1.msra.mxu0 0.0
    %128 = vmatprep.mubr.f32.mxu0 0.0
    %129 = vmatmul.mubr.f32.gmra.mrb[0].mxu0 %v62
    %v130 = vpop.f32.mrb[0].mxu0
    %v131 = vadd.f32 %v58, %v130
    %v132 = vpop.f32.mrb[0].mxu0
    %133 = vdwg.mxu0
    %v134 = vmax.f32 %v131, 0.0
    %v135 = vld [vmem:[#allocation4] sm:$0xff]
    %v136 = vld [vmem:[#allocation4 + $0x8] sm:$0xff]
    %v137 = vld [vmem:[#allocation4 + $0x10] sm:$0xff]
    %v138 = vld [vmem:[#allocation4 + $0x18] sm:$0xff]
    %v139 = vld [vmem:[%s4] sm:$0x1]
    %v141 = vlaneseq
    %v142 = vshrl.u32 %v141, 7
    %v143 = vsub.s32 0, %v142
    %v144 = vrot.slane %v139, %v143
    %v147 = vsel %vm60, %v134, 0
    %149 = vmatprep.subr.mxu0 0.0
    %150 = vmatpush1.msra.mxu0 %v135
    %151 = vmatprep.subr.mxu0 0.0
    %152 = vmatpush1.msra.mxu0 %v136
    %153 = vmatprep.subr.mxu0 0.0
    %154 = vmatpush1.msra.mxu0 %v137
    %155 = vmatprep.subr.mxu0 0.0
    %156 = vmatpush1.msra.mxu0 %v138
    %157 = vmatprep.subr.mxu0 0.0
    %158 = vmatpush1.msra.mxu0 0.0
    %159 = vmatprep.subr.mxu0 0.0
    %160 = vmatpush1.msra.mxu0 0.0
    %161 = vmatprep.subr.mxu0 0.0
    %162 = vmatpush1.msra.mxu0 0.0
    %163 = vmatprep.subr.mxu0 0.0
    %164 = vmatpush1.msra.mxu0 0.0
    %165 = vmatprep.subr.mxu0 0.0
    %166 = vmatpush1.msra.mxu0 0.0
    %167 = vmatprep.subr.mxu0 0.0
    %168 = vmatpush1.msra.mxu0 0.0
    %169 = vmatprep.subr.mxu0 0.0
    %170 = vmatpush1.msra.mxu0 0.0
    %171 = vmatprep.subr.mxu0 0.0
    %172 = vmatpush1.msra.mxu0 0.0
    %173 = vmatprep.subr.mxu0 0.0
    %174 = vmatpush1.msra.mxu0 0.0
    %175 = vmatprep.subr.mxu0 0.0
    %176 = vmatpush1.msra.mxu0 0.0
    %177 = vmatprep.subr.mxu0 0.0
    %178 = vmatpush1.msra.mxu0 0.0
    %179 = vmatprep.subr.mxu0 0.0
    %180 = vmatpush1.msra.mxu0 0.0
    %181 = vmatprep.subr.mxu0 0.0
    %182 = vmatpush1.msra.mxu0 0.0
    %183 = vmatprep.subr.mxu0 0.0
    %184 = vmatpush1.msra.mxu0 0.0
    %185 = vmatprep.subr.mxu0 0.0
    %186 = vmatpush1.msra.mxu0 0.0
    %187 = vmatprep.subr.mxu0 0.0
    %188 = vmatpush1.msra.mxu0 0.0
    %189 = vmatprep.subr.mxu0 0.0
    %190 = vmatpush1.msra.mxu0 0.0
    %191 = vmatprep.subr.mxu0 0.0
    %192 = vmatpush1.msra.mxu0 0.0
    %193 = vmatprep.subr.mxu0 0.0
    %194 = vmatpush1.msra.mxu0 0.0
    %195 = vmatprep.subr.mxu0 0.0
    %196 = vmatpush1.msra.mxu0 0.0
    %197 = vmatprep.subr.mxu0 0.0
    %198 = vmatpush1.msra.mxu0 0.0
    %199 = vmatprep.subr.mxu0 0.0
    %200 = vmatpush1.msra.mxu0 0.0
    %201 = vmatprep.subr.mxu0 0.0
    %202 = vmatpush1.msra.mxu0 0.0
    %203 = vmatprep.subr.mxu0 0.0
    %204 = vmatpush1.msra.mxu0 0.0
    %205 = vmatprep.subr.mxu0 0.0
    %206 = vmatpush1.msra.mxu0 0.0
    %207 = vmatprep.subr.mxu0 0.0
    %208 = vmatpush1.msra.mxu0 0.0
    %209 = vmatprep.subr.mxu0 0.0
    %210 = vmatpush1.msra.mxu0 0.0
    %211 = vmatprep.subr.mxu0 0.0
    %212 = vmatpush1.msra.mxu0 0.0
    %213 = vmatprep.mubr.f32.mxu0 0.0
    %214 = vmatmul.mubr.f32.gmra.mrb[0].mxu0 %v147
    %v215 = vpop.f32.mrb[0].mxu0
    %v216 = vadd.f32 %v144, %v215
    %v217 = vpop.f32.mrb[0].mxu0
    %218 = vdwg.mxu0
    %vm219 = vcmask 257024
    %220 = vst.msk [vmem:[%s5] sm:$0xf] %vm219, %v216
    // Predicated region
    $region30: #{forward_core.2} parent=1 // pred_check
      _
    $region31: #{forward_core.2} parent=1 // pred_check_branch
      %222 = sbr.rel (0) target = $region33
    $region32: #{forward_core.2} parent=1 // pred_region
      _
    $region33: #{forward_core.2} parent=1 // pred_fallthru
      _
    // Predicated region
    $region34: #{forward_core.2} parent=1 // pred_check
      _
    $region35: #{forward_core.2} parent=1 // pred_check_branch
      %224 = sbr.rel (0) target = $region37
    $region36: #{forward_core.2} parent=1 // pred_region
      _
    $region37: #{forward_core.2} parent=1 // pred_fallthru
      _
    %225 = vsyncpa [#allocation3], 1
    %226 = vsyncpa [#allocation5], 1

// kernel: forward_core.3
$region0: #{forward_core.3}
  #allocation0 [shape = 'u32[]', space=smem, size = 0x4, offset = 0x4, fixed_abs, tag = 'smem constant byte address 0x4 - core index']
  #allocation1 [shape = 'u32[144,128]{1,0:T(1,128)}', space=vmem, size = 0x12000, scoped, tag = 'internal scratch']
  #allocation2 [shape = 'f32[1,8]{1,0:T(1,128)}', space=vmem, size = 0x200, scoped, tag = 'scratch operand']
  #allocation3 [shape = 'f32[1,8]{1,0:T(1,128)}', space=vmem, size = 0x200, scoped, tag = 'scratch operand']
  %s0 = inlined_call_operand.vmem [shape: f32[2,5,16,32], index: 0, kind: input, shape index: {}]
  %s1 = inlined_call_operand.vmem [shape: f32[2,5,1,16], index: 1, kind: input, shape index: {}]
  %s2 = inlined_call_operand.vmem [shape: f32[2,5,16,1], index: 2, kind: input, shape index: {}]
  %s3 = inlined_call_operand.vmem [shape: f32[8,32], index: 3, kind: input, shape index: {}]
  %s4 = inlined_call_operand.vmem [shape: f32[32,8], index: 4, kind: input, shape index: {}]
  %s5 = inlined_call_operand.vmem [shape: f32[1,8], index: 5, kind: input, shape index: {}]
  %s6 = inlined_call_operand.vmem [shape: f32[8,8], index: 6, kind: input, shape index: {}]
  %s7 = inlined_call_operand.vmem [shape: f32[2,5,1,8], index: 7, kind: output, shape index: {0}]
  %s8 = inlined_call_operand.vmem [shape: s32[2,5,1,8], index: 8, kind: output, shape index: {1}]
  %9 = xla_tuple %s7, %s8
  %s10 = sld [smem:[#allocation0]]
  $region81: #{forward_core.3} parent=0
    _
  %s12 = ssub.s32 1, %s10
  %s13 = scalar_select 0, %s12, %s10
  loop: start=0, step=1, limit=12
  $region2: #{forward_core.3} parent=0 // loop_pre_header
    _
  $region3: #{forward_core.3} parent=0 // loop_header
    %s15 = sphi 0, %s19
    %p16 = scmp.ge.s32.totalorder %s15, 12
    %s22 = sphi 0, %s34
    %s23 = sphi 0, %s30
    %s24 = sphi 0, %s22
    %s25 = sphi 0, %s23
    %s26 = sphi 0, %s24
    %s27 = sphi 0, %s25
    %s39 = sphi 0, %s41
    %s42 = sphi 0, %s39
    %s43 = sphi 0, %s42
    %s59 = sphi 0, %s43
    %s67 = sphi 0, %s69
    %s70 = sphi 0, %s67
    %s71 = sphi 0, %s70
    %s87 = sphi 0, %s71
    %s95 = sphi 0, %s97
    %s98 = sphi 0, %s95
    %s99 = sphi 0, %s98
    %s115 = sphi 0, %s99
    %s119 = sphi 0, %s119
    %s121 = sphi 0, %s119
    %s122 = sphi 0, %s121
    %s136 = sphi 0, %s122
    %s140 = sphi 0, %s140
    %s142 = sphi 0, %s140
    %s143 = sphi 0, %s142
    %s157 = sphi 0, %s143
    %s161 = sphi 0, %s161
    %s163 = sphi 0, %s161
    %s164 = sphi 0, %s163
    %s178 = sphi 0, %s164
    %s182 = sphi 0, %s182
    %s184 = sphi 0, %s182
    %s185 = sphi 0, %s184
    %s199 = sphi 0, %s185
    %s207 = sphi 0, %s209
    %s210 = sphi 0, %s207
    %s211 = sphi 0, %s210
    %s227 = sphi 0, %s211
    %s235 = sphi 0, %s237
    %s238 = sphi 0, %s235
    %s239 = sphi 0, %s238
    %s255 = sphi 0, %s239
  $region4: #{forward_core.3} parent=0 // loop_header_branch
    %18 = sbr.rel (%p16) target = $region8
  $region5: #{forward_core.3} parent=0 // loop_body
    %s20 = ssub.s32 %s15, 1
    %s21 = ssub.s32 %s15, 2
    %s28 = sadd.s32 1, %s23
    %p29 = scmp.ge.s32.totalorder %s28, 5
    %s30 = scalar_select %p29, 0, %s28
    %s31 = sadd.s32 1, %s22
    %s32 = scalar_select %p29, %s31, %s22
    %p33 = scmp.ge.s32.totalorder %s32, 2
    %s34 = scalar_select %p33, 0, %s32
    %s35 = ssub.s32 %s22, %s34
    %s36 = ssub.s32 %s23, %s30
    %s37 = sor.u32 %s35, %s36
    %p38 = scmp.eq.s32.totalorder %s37, 0
    %s40 = sadd.s32 %s39, 1
    %s41 = scalar_select %p38, %s39, %s40
    %p44 = pneg %p38
    %p45 = scmp.eq.s32.totalorder %s15, 9
    %p46 = por %p44, %p45
    %p47 = scmp.ne.s32.totalorder %s39, %s42
    %p48 = scmp.eq.s32.totalorder %s15, 0
    %p49 = por %p47, %p48
    %p50 = scmp.ne.s32.totalorder %s39, %s42
    %p51 = scmp.eq.s32.totalorder %s20, 9
    %p52 = por %p50, %p51
    %p53 = scmp.ne.s32.totalorder %s42, %s43
    %p54 = scmp.eq.s32.totalorder %s20, 0
    %p55 = por %p53, %p54
    %p56 = scmp.ne.s32.totalorder %s42, %s43
    %p57 = scmp.eq.s32.totalorder %s21, 9
    %p58 = por %p56, %p57
    %p60 = scmp.ne.s32.totalorder %s43, %s59
    %p61 = scmp.eq.s32.totalorder %s21, 0
    %p62 = por %p60, %p61
    %s63 = ssub.s32 %s22, %s34
    %s64 = ssub.s32 %s23, %s30
    %s65 = sor.u32 %s63, %s64
    %p66 = scmp.eq.s32.totalorder %s65, 0
    %s68 = sadd.s32 %s67, 1
    %s69 = scalar_select %p66, %s67, %s68
    %p72 = pneg %p66
    %p73 = scmp.eq.s32.totalorder %s15, 9
    %p74 = por %p72, %p73
    %p75 = scmp.ne.s32.totalorder %s67, %s70
    %p76 = scmp.eq.s32.totalorder %s15, 0
    %p77 = por %p75, %p76
    %p78 = scmp.ne.s32.totalorder %s67, %s70
    %p79 = scmp.eq.s32.totalorder %s20, 9
    %p80 = por %p78, %p79
    %p81 = scmp.ne.s32.totalorder %s70, %s71
    %p82 = scmp.eq.s32.totalorder %s20, 0
    %p83 = por %p81, %p82
    %p84 = scmp.ne.s32.totalorder %s70, %s71
    %p85 = scmp.eq.s32.totalorder %s21, 9
    %p86 = por %p84, %p85
    %p88 = scmp.ne.s32.totalorder %s71, %s87
    %p89 = scmp.eq.s32.totalorder %s21, 0
    %p90 = por %p88, %p89
    %s91 = ssub.s32 %s22, %s34
    %s92 = ssub.s32 %s23, %s30
    %s93 = sor.u32 %s91, %s92
    %p94 = scmp.eq.s32.totalorder %s93, 0
    %s96 = sadd.s32 %s95, 1
    %s97 = scalar_select %p94, %s95, %s96
    %p100 = pneg %p94
    %p101 = scmp.eq.s32.totalorder %s15, 9
    %p102 = por %p100, %p101
    %p103 = scmp.ne.s32.totalorder %s95, %s98
    %p104 = scmp.eq.s32.totalorder %s15, 0
    %p105 = por %p103, %p104
    %p106 = scmp.ne.s32.totalorder %s95, %s98
    %p107 = scmp.eq.s32.totalorder %s20, 9
    %p108 = por %p106, %p107
    %p109 = scmp.ne.s32.totalorder %s98, %s99
    %p110 = scmp.eq.s32.totalorder %s20, 0
    %p111 = por %p109, %p110
    %p112 = scmp.ne.s32.totalorder %s98, %s99
    %p113 = scmp.eq.s32.totalorder %s21, 9
    %p114 = por %p112, %p113
    %p116 = scmp.ne.s32.totalorder %s99, %s115
    %p117 = scmp.eq.s32.totalorder %s21, 0
    %p118 = por %p116, %p117
    %s120 = sadd.s32 %s119, 1
    %p123 = scmp.eq.s32.totalorder %s15, 9
    %p124 = scmp.ne.s32.totalorder %s119, %s121
    %p125 = scmp.eq.s32.totalorder %s15, 0
    %p126 = por %p124, %p125
    %p127 = scmp.ne.s32.totalorder %s119, %s121
    %p128 = scmp.eq.s32.totalorder %s20, 9
    %p129 = por %p127, %p128
    %p130 = scmp.ne.s32.totalorder %s121, %s122
    %p131 = scmp.eq.s32.totalorder %s20, 0
    %p132 = por %p130, %p131
    %p133 = scmp.ne.s32.totalorder %s121, %s122
    %p134 = scmp.eq.s32.totalorder %s21, 9
    %p135 = por %p133, %p134
    %p137 = scmp.ne.s32.totalorder %s122, %s136
    %p138 = scmp.eq.s32.totalorder %s21, 0
    %p139 = por %p137, %p138
    %s141 = sadd.s32 %s140, 1
    %p144 = scmp.eq.s32.totalorder %s15, 9
    %p145 = scmp.ne.s32.totalorder %s140, %s142
    %p146 = scmp.eq.s32.totalorder %s15, 0
    %p147 = por %p145, %p146
    %p148 = scmp.ne.s32.totalorder %s140, %s142
    %p149 = scmp.eq.s32.totalorder %s20, 9
    %p150 = por %p148, %p149
    %p151 = scmp.ne.s32.totalorder %s142, %s143
    %p152 = scmp.eq.s32.totalorder %s20, 0
    %p153 = por %p151, %p152
    %p154 = scmp.ne.s32.totalorder %s142, %s143
    %p155 = scmp.eq.s32.totalorder %s21, 9
    %p156 = por %p154, %p155
    %p158 = scmp.ne.s32.totalorder %s143, %s157
    %p159 = scmp.eq.s32.totalorder %s21, 0
    %p160 = por %p158, %p159
    %s162 = sadd.s32 %s161, 1
    %p165 = scmp.eq.s32.totalorder %s15, 9
    %p166 = scmp.ne.s32.totalorder %s161, %s163
    %p167 = scmp.eq.s32.totalorder %s15, 0
    %p168 = por %p166, %p167
    %p169 = scmp.ne.s32.totalorder %s161, %s163
    %p170 = scmp.eq.s32.totalorder %s20, 9
    %p171 = por %p169, %p170
    %p172 = scmp.ne.s32.totalorder %s163, %s164
    %p173 = scmp.eq.s32.totalorder %s20, 0
    %p174 = por %p172, %p173
    %p175 = scmp.ne.s32.totalorder %s163, %s164
    %p176 = scmp.eq.s32.totalorder %s21, 9
    %p177 = por %p175, %p176
    %p179 = scmp.ne.s32.totalorder %s164, %s178
    %p180 = scmp.eq.s32.totalorder %s21, 0
    %p181 = por %p179, %p180
    %s183 = sadd.s32 %s182, 1
    %p186 = scmp.eq.s32.totalorder %s15, 9
    %p187 = scmp.ne.s32.totalorder %s182, %s184
    %p188 = scmp.eq.s32.totalorder %s15, 0
    %p189 = por %p187, %p188
    %p190 = scmp.ne.s32.totalorder %s182, %s184
    %p191 = scmp.eq.s32.totalorder %s20, 9
    %p192 = por %p190, %p191
    %p193 = scmp.ne.s32.totalorder %s184, %s185
    %p194 = scmp.eq.s32.totalorder %s20, 0
    %p195 = por %p193, %p194
    %p196 = scmp.ne.s32.totalorder %s184, %s185
    %p197 = scmp.eq.s32.totalorder %s21, 9
    %p198 = por %p196, %p197
    %p200 = scmp.ne.s32.totalorder %s185, %s199
    %p201 = scmp.eq.s32.totalorder %s21, 0
    %p202 = por %p200, %p201
    %s203 = ssub.s32 %s22, %s34
    %s204 = ssub.s32 %s23, %s30
    %s205 = sor.u32 %s203, %s204
    %p206 = scmp.eq.s32.totalorder %s205, 0
    %s208 = sadd.s32 %s207, 1
    %s209 = scalar_select %p206, %s207, %s208
    %p212 = pneg %p206
    %p213 = scmp.eq.s32.totalorder %s15, 9
    %p214 = por %p212, %p213
    %p215 = scmp.ne.s32.totalorder %s207, %s210
    %p216 = scmp.eq.s32.totalorder %s15, 0
    %p217 = por %p215, %p216
    %p218 = scmp.ne.s32.totalorder %s207, %s210
    %p219 = scmp.eq.s32.totalorder %s20, 9
    %p220 = por %p218, %p219
    %p221 = scmp.ne.s32.totalorder %s210, %s211
    %p222 = scmp.eq.s32.totalorder %s20, 0
    %p223 = por %p221, %p222
    %p224 = scmp.ne.s32.totalorder %s210, %s211
    %p225 = scmp.eq.s32.totalorder %s21, 9
    %p226 = por %p224, %p225
    %p228 = scmp.ne.s32.totalorder %s211, %s227
    %p229 = scmp.eq.s32.totalorder %s21, 0
    %p230 = por %p228, %p229
    %s231 = ssub.s32 %s22, %s34
    %s232 = ssub.s32 %s23, %s30
    %s233 = sor.u32 %s231, %s232
    %p234 = scmp.eq.s32.totalorder %s233, 0
    %s236 = sadd.s32 %s235, 1
    %s237 = scalar_select %p234, %s235, %s236
    %p240 = pneg %p234
    %p241 = scmp.eq.s32.totalorder %s15, 9
    %p242 = por %p240, %p241
    %p243 = scmp.ne.s32.totalorder %s235, %s238
    %p244 = scmp.eq.s32.totalorder %s15, 0
    %p245 = por %p243, %p244
    %p246 = scmp.ne.s32.totalorder %s235, %s238
    %p247 = scmp.eq.s32.totalorder %s20, 9
    %p248 = por %p246, %p247
    %p249 = scmp.ne.s32.totalorder %s238, %s239
    %p250 = scmp.eq.s32.totalorder %s20, 0
    %p251 = por %p249, %p250
    %p252 = scmp.ne.s32.totalorder %s238, %s239
    %p253 = scmp.eq.s32.totalorder %s21, 9
    %p254 = por %p252, %p253
    %p256 = scmp.ne.s32.totalorder %s239, %s255
    %p257 = scmp.eq.s32.totalorder %s21, 0
    %p258 = por %p256, %p257
    %p259 = scmp.le.s32.totalorder 1, %s15
    %p260 = scmp.lt.s32.totalorder %s15, 11
    %p261 = pnand %p259, %p260
    %p262 = pneg %p261
    // Predicated region
    $region9: #{forward_core.3} parent=5 // pred_check
      _
    $region10: #{forward_core.3} parent=5 // pred_check_branch
      %264 = sbr.rel (%p261) target = $region12
    $region11: #{forward_core.3} parent=5 // pred_region
      %s265 = ssub.s32 %s15, 1
      // Predicated region
      $region13: #{forward_core.3} parent=11 // pred_check
        %p266 = pneg %p132
      $region14: #{forward_core.3} parent=11 // pred_check_branch
        %268 = sbr.rel (%p266) target = $region16
      $region15: #{forward_core.3} parent=11 // pred_region
        _
      $region16: #{forward_core.3} parent=11 // pred_fallthru
        _
      // Predicated region
      $region17: #{forward_core.3} parent=11 // pred_check
        %p269 = pneg %p153
      $region18: #{forward_core.3} parent=11 // pred_check_branch
        %271 = sbr.rel (%p269) target = $region20
      $region19: #{forward_core.3} parent=11 // pred_region
        _
      $region20: #{forward_core.3} parent=11 // pred_fallthru
        _
      // Predicated region
      $region21: #{forward_core.3} parent=11 // pred_check
        %p272 = pneg %p174
      $region22: #{forward_core.3} parent=11 // pred_check_branch
        %274 = sbr.rel (%p272) target = $region24
      $region23: #{forward_core.3} parent=11 // pred_region
        _
      $region24: #{forward_core.3} parent=11 // pred_fallthru
        _
      // Predicated region
      $region25: #{forward_core.3} parent=11 // pred_check
        %p275 = pneg %p195
      $region26: #{forward_core.3} parent=11 // pred_check_branch
        %277 = sbr.rel (%p275) target = $region28
      $region27: #{forward_core.3} parent=11 // pred_region
        _
      $region28: #{forward_core.3} parent=11 // pred_fallthru
        _
    $region12: #{forward_core.3} parent=5 // pred_fallthru
      _
    %p278 = scmp.lt.s32.totalorder %s15, 10
    // Predicated region
    $region29: #{forward_core.3} parent=5 // pred_check
      %p279 = pneg %p278
    $region30: #{forward_core.3} parent=5 // pred_check_branch
      %281 = sbr.rel (%p279) target = $region32
    $region31: #{forward_core.3} parent=5 // pred_region
      // Predicated region
      $region33: #{forward_core.3} parent=31 // pred_check
        %p282 = pneg %p49
      $region34: #{forward_core.3} parent=31 // pred_check_branch
        %284 = sbr.rel (%p282) target = $region36
      $region35: #{forward_core.3} parent=31 // pred_region
        %p285 = scmp.lt.s32.totalorder %s22, 1
        %s286 = scalar_select %p285, %s22, 1
        %p287 = scmp.lt.s32.totalorder %s23, 4
        %s288 = scalar_select %p287, %s23, 4
        %s289 = smul.addr %s288, 2
        %s290 = smul.addr %s286, 10
        %s291 = sadd.s32 %s289, %s290
        %s292 = smul.addr %s291, 8
        %s293 = scalar_lea.vmem %s0, %s292
      $region36: #{forward_core.3} parent=31 // pred_fallthru
        _
      // Predicated region
      $region37: #{forward_core.3} parent=31 // pred_check
        %p294 = pneg %p77
      $region38: #{forward_core.3} parent=31 // pred_check_branch
        %296 = sbr.rel (%p294) target = $region40
      $region39: #{forward_core.3} parent=31 // pred_region
        %p297 = scmp.lt.s32.totalorder %s22, 1
        %s298 = scalar_select %p297, %s22, 1
        %p299 = scmp.lt.s32.totalorder %s23, 4
        %s300 = scalar_select %p299, %s23, 4
        %s301 = smul.addr %s298, 5
        %s302 = sadd.s32 %s300, %s301
        %s303 = scalar_lea.vmem %s1, %s302
      $region40: #{forward_core.3} parent=31 // pred_fallthru
        _
      // Predicated region
      $region41: #{forward_core.3} parent=31 // pred_check
        %p304 = pneg %p105
      $region42: #{forward_core.3} parent=31 // pred_check_branch
        %306 = sbr.rel (%p304) target = $region44
      $region43: #{forward_core.3} parent=31 // pred_region
        %p307 = scmp.lt.s32.totalorder %s22, 1
        %s308 = scalar_select %p307, %s22, 1
        %p309 = scmp.lt.s32.totalorder %s23, 4
        %s310 = scalar_select %p309, %s23, 4
        %s311 = smul.addr %s310, 2
        %s312 = smul.addr %s308, 10
        %s313 = sadd.s32 %s311, %s312
        %s314 = smul.addr %s313, 8
        %s315 = scalar_lea.vmem %s2, %s314
      $region44: #{forward_core.3} parent=31 // pred_fallthru
        _
    $region32: #{forward_core.3} parent=5 // pred_fallthru
      _
    %p316 = scmp.le.s32.totalorder 1, %s15
    %p317 = scmp.lt.s32.totalorder %s15, 11
    %p318 = pnand %p316, %p317
    %p319 = pneg %p318
    // Predicated region
    $region45: #{forward_core.3} parent=5 // pred_check
      _
    $region46: #{forward_core.3} parent=5 // pred_check_branch
      %321 = sbr.rel (%p318) target = $region48
    $region47: #{forward_core.3} parent=5 // pred_region
      %s322 = ssub.s32 %s15, 1
      %p323 = scmp.lt.s32.totalorder %s24, 1
      %s324 = scalar_select %p323, %s24, 1
      %p325 = scmp.lt.s32.totalorder %s25, 4
      %s326 = scalar_select %p325, %s25, 4
      %s327 = smul.addr %s326, 2
      %s328 = smul.addr %s324, 10
      %s329 = sadd.s32 %s327, %s328
      %s330 = smul.addr %s329, 8
      %s331 = scalar_lea.vmem %s0, %s330
      %p332 = pneg %p55
      %p333 = pneg %p52
      %p334 = scmp.lt.s32.totalorder %s24, 1
      %s335 = scalar_select %p334, %s24, 1
      %p336 = scmp.lt.s32.totalorder %s25, 4
      %s337 = scalar_select %p336, %s25, 4
      %s338 = smul.addr %s335, 5
      %s339 = sadd.s32 %s337, %s338
      %s340 = scalar_lea.vmem %s1, %s339
      %p341 = pneg %p83
      %p342 = pneg %p80
      %p343 = scmp.lt.s32.totalorder %s24, 1
      %s344 = scalar_select %p343, %s24, 1
      %p345 = scmp.lt.s32.totalorder %s25, 4
      %s346 = scalar_select %p345, %s25, 4
      %s347 = smul.addr %s346, 2
      %s348 = smul.addr %s344, 10
      %s349 = sadd.s32 %s347, %s348
      %s350 = smul.addr %s349, 8
      %s351 = scalar_lea.vmem %s2, %s350
      %p352 = pneg %p111
      %p353 = pneg %p108
      %p354 = pneg %p132
      %p355 = pneg %p129
      %p356 = pneg %p153
      %p357 = pneg %p150
      %p358 = pneg %p174
      %p359 = pneg %p171
      %p360 = pneg %p195
      %p361 = pneg %p192
      %p362 = pneg %p223
      %p363 = pneg %p220
      %p364 = scmp.lt.s32.totalorder %s24, 1
      %s365 = scalar_select %p364, %s24, 1
      %p366 = scmp.lt.s32.totalorder %s25, 4
      %s367 = scalar_select %p366, %s25, 4
      %s368 = smul.addr %s365, 5
      %s369 = sadd.s32 %s367, %s368
      %s370 = scalar_lea.vmem %s7, %s369
      %p371 = pneg %p251
      %p372 = pneg %p248
      %p373 = scmp.lt.s32.totalorder %s24, 1
      %s374 = scalar_select %p373, %s24, 1
      %p375 = scmp.lt.s32.totalorder %s25, 4
      %s376 = scalar_select %p375, %s25, 4
      %s377 = smul.addr %s374, 5
      %s378 = sadd.s32 %s376, %s377
      %s379 = scalar_lea.vmem %s8, %s378
      %p380 = scmp.lt.s32.totalorder %s24, 1
      %s381 = scalar_select %p380, %s24, 1
      %p382 = scmp.lt.s32.totalorder %s25, 4
      %s383 = scalar_select %p382, %s25, 4
      %s384 = smul.addr %s383, 2
      %s385 = smul.addr %s381, 10
      %s386 = sadd.s32 %s384, %s385
      %s387 = smul.addr %s386, 8
      %s388 = scalar_lea.vmem %s0, %s387
      %p389 = scmp.lt.s32.totalorder %s24, 1
      %s390 = scalar_select %p389, %s24, 1
      %p391 = scmp.lt.s32.totalorder %s25, 4
      %s392 = scalar_select %p391, %s25, 4
      %s393 = smul.addr %s390, 5
      %s394 = sadd.s32 %s392, %s393
      %s395 = scalar_lea.vmem %s1, %s394
      %p396 = scmp.lt.s32.totalorder %s24, 1
      %s397 = scalar_select %p396, %s24, 1
      %p398 = scmp.lt.s32.totalorder %s25, 4
      %s399 = scalar_select %p398, %s25, 4
      %s400 = smul.addr %s399, 2
      %s401 = smul.addr %s397, 10
      %s402 = sadd.s32 %s400, %s401
      %s403 = smul.addr %s402, 8
      %s404 = scalar_lea.vmem %s2, %s403
      %p405 = scmp.lt.s32.totalorder %s24, 1
      %s406 = scalar_select %p405, %s24, 1
      %p407 = scmp.lt.s32.totalorder %s25, 4
      %s408 = scalar_select %p407, %s25, 4
      %s409 = smul.addr %s406, 5
      %s410 = sadd.s32 %s408, %s409
      %s411 = scalar_lea.vmem %s7, %s410
      %p412 = scmp.lt.s32.totalorder %s24, 1
      %s413 = scalar_select %p412, %s24, 1
      %p414 = scmp.lt.s32.totalorder %s25, 4
      %s415 = scalar_select %p414, %s25, 4
      %s416 = smul.addr %s413, 5
      %s417 = sadd.s32 %s415, %s416
      %s418 = scalar_lea.vmem %s8, %s417
      %v419 = vlaneseq
      %v420 = vand.u32 %v419, 127
      %p421 = scmp.eq.s32.totalorder %s25, 0
      // Predicated region
      $region49: #{forward_core.3} parent=47 // pred_check
        %p422 = pneg %p421
      $region50: #{forward_core.3} parent=47 // pred_check_branch
        %424 = sbr.rel (%p422) target = $region52
      $region51: #{forward_core.3} parent=47 // pred_region
        %vm425 = vcmask 57344
        %426 = vst.msk [vmem:[#allocation3] sm:$0x1] %vm425, 0.0
      $region52: #{forward_core.3} parent=47 // pred_fallthru
        _
      %v427 = vld [vmem:[#allocation3] sm:$0x1]
      %v428 = vld [vmem:[%s3] sm:$0xff]
      %vm429 = vcmask 64512
      %v431 = vsel %vm429, %v427, 0
      %433 = vmatprep.subr.mxu0 0.0
      %434 = vmatpush1.msra.mxu0 %v428
      %435 = vmatprep.subr.mxu0 0.0
      %436 = vmatpush1.msra.mxu0 0.0
      %437 = vmatprep.subr.mxu0 0.0
      %438 = vmatpush1.msra.mxu0 0.0
      %439 = vmatprep.subr.mxu0 0.0
      %440 = vmatpush1.msra.mxu0 0.0
      %441 = vmatprep.subr.mxu0 0.0
      %442 = vmatpush1.msra.mxu0 0.0
      %443 = vmatprep.subr.mxu0 0.0
      %444 = vmatpush1.msra.mxu0 0.0
      %445 = vmatprep.subr.mxu0 0.0
      %446 = vmatpush1.msra.mxu0 0.0
      %447 = vmatprep.subr.mxu0 0.0
      %448 = vmatpush1.msra.mxu0 0.0
      %449 = vmatprep.subr.mxu0 0.0
      %450 = vmatpush1.msra.mxu0 0.0
      %451 = vmatprep.subr.mxu0 0.0
      %452 = vmatpush1.msra.mxu0 0.0
      %453 = vmatprep.subr.mxu0 0.0
      %454 = vmatpush1.msra.mxu0 0.0
      %455 = vmatprep.subr.mxu0 0.0
      %456 = vmatpush1.msra.mxu0 0.0
      %457 = vmatprep.subr.mxu0 0.0
      %458 = vmatpush1.msra.mxu0 0.0
      %459 = vmatprep.subr.mxu0 0.0
      %460 = vmatpush1.msra.mxu0 0.0
      %461 = vmatprep.subr.mxu0 0.0
      %462 = vmatpush1.msra.mxu0 0.0
      %463 = vmatprep.subr.mxu0 0.0
      %464 = vmatpush1.msra.mxu0 0.0
      %465 = vmatprep.subr.mxu0 0.0
      %466 = vmatpush1.msra.mxu0 0.0
      %467 = vmatprep.subr.mxu0 0.0
      %468 = vmatpush1.msra.mxu0 0.0
      %469 = vmatprep.subr.mxu0 0.0
      %470 = vmatpush1.msra.mxu0 0.0
      %471 = vmatprep.subr.mxu0 0.0
      %472 = vmatpush1.msra.mxu0 0.0
      %473 = vmatprep.subr.mxu0 0.0
      %474 = vmatpush1.msra.mxu0 0.0
      %475 = vmatprep.subr.mxu0 0.0
      %476 = vmatpush1.msra.mxu0 0.0
      %477 = vmatprep.subr.mxu0 0.0
      %478 = vmatpush1.msra.mxu0 0.0
      %479 = vmatprep.subr.mxu0 0.0
      %480 = vmatpush1.msra.mxu0 0.0
      %481 = vmatprep.subr.mxu0 0.0
      %482 = vmatpush1.msra.mxu0 0.0
      %483 = vmatprep.subr.mxu0 0.0
      %484 = vmatpush1.msra.mxu0 0.0
      %485 = vmatprep.subr.mxu0 0.0
      %486 = vmatpush1.msra.mxu0 0.0
      %487 = vmatprep.subr.mxu0 0.0
      %488 = vmatpush1.msra.mxu0 0.0
      %489 = vmatprep.subr.mxu0 0.0
      %490 = vmatpush1.msra.mxu0 0.0
      %491 = vmatprep.subr.mxu0 0.0
      %492 = vmatpush1.msra.mxu0 0.0
      %493 = vmatprep.subr.mxu0 0.0
      %494 = vmatpush1.msra.mxu0 0.0
      %495 = vmatprep.subr.mxu0 0.0
      %496 = vmatpush1.msra.mxu0 0.0
      %497 = vmatprep.mubr.f32.mxu0 0.0
      %498 = vmatmul.mubr.f32.gmra.mrb[0].mxu0 %v431
      %v499 = vpop.f32.mrb[0].mxu0
      %v500 = vadd.f32 0.0, %v499
      %v501 = vpop.f32.mrb[0].mxu0
      %502 = vdwg.mxu0
      %v503 = vld [vmem:[%s404] sm:$0xff]
      %v504 = vld [vmem:[%s404 + $0x8] sm:$0xff]
      %vm505 = vcmp.gt.f32.partialorder %v503, 0.5
      %vm506 = vcmp.gt.f32.partialorder %v504, 0.5
      %p507 = scmp.gt.s32.totalorder %s25, 0
      %s508 = scalar_select %p507, 1, 0
      %v509 = vstv %s508
      %vm510 = vcmp.eq.s32.totalorder %v509, 1
      %vm511 = vmand %vm505, %vm510
      %vm512 = vmand %vm506, %vm510
      %v513 = vld [vmem:[%s388] sm:$0xff]
      %v514 = vld [vmem:[%s388 + $0x8] sm:$0xff]
      %v515 = vsel %vm511, 1, 0
      %v516 = vsel %vm512, 1, 0
      %517 = vset.pattern.permute.xlu0 0
      %518 = vperm.xlu0 %517, %v515
      %v519 = vpop.permute.xlu0 %518
      %520 = vset.pattern.permute.xlu0 0
      %521 = vperm.xlu0 %520, %v516
      %v522 = vpop.permute.xlu0 %521
      %vm523 = vcmp.eq.s32.totalorder %v519, 1
      %vm524 = vcmp.eq.s32.totalorder %v522, 1
      %v525 = vlaneseq
      %v526 = vshrl.u32 %v525, 7
      %v527 = vsub.s32 0, %v526
      %v528 = vrot.slane %v500, %v527
      %v529 = vsel %vm523, %v528, %v513
      %v530 = vsel %vm524, %v528, %v514
      %v531 = vld [vmem:[%s395] sm:$0x1]
      %vm532 = vcmask 122880
      %v533 = vsel %vm532, %v531, 0.0
      %534 = vadd.xlane.f32.xlu0 %v533
      %v535 = vpop.xlane.xlu0 %534
      %v536 = vmax.f32 %v535, 1.0
      %vm537 = vcmask 130048
      %v539 = vsel %vm537, %v531, 0
      %541 = vmatprep.subr.mxu0 0.0
      %542 = vmatpush1.msra.mxu0 %v529
      %543 = vmatprep.subr.mxu0 0.0
      %544 = vmatpush1.msra.mxu0 %v530
      %545 = vmatprep.subr.mxu0 0.0
      %546 = vmatpush1.msra.mxu0 0.0
      %547 = vmatprep.subr.mxu0 0.0
      %548 = vmatpush1.msra.mxu0 0.0
      %549 = vmatprep.subr.mxu0 0.0
      %550 = vmatpush1.msra.mxu0 0.0
      %551 = vmatprep.subr.mxu0 0.0
      %552 = vmatpush1.msra.mxu0 0.0
      %553 = vmatprep.subr.mxu0 0.0
      %554 = vmatpush1.msra.mxu0 0.0
      %555 = vmatprep.subr.mxu0 0.0
      %556 = vmatpush1.msra.mxu0 0.0
      %557 = vmatprep.subr.mxu0 0.0
      %558 = vmatpush1.msra.mxu0 0.0
      %559 = vmatprep.subr.mxu0 0.0
      %560 = vmatpush1.msra.mxu0 0.0
      %561 = vmatprep.subr.mxu0 0.0
      %562 = vmatpush1.msra.mxu0 0.0
      %563 = vmatprep.subr.mxu0 0.0
      %564 = vmatpush1.msra.mxu0 0.0
      %565 = vmatprep.subr.mxu0 0.0
      %566 = vmatpush1.msra.mxu0 0.0
      %567 = vmatprep.subr.mxu0 0.0
      %568 = vmatpush1.msra.mxu0 0.0
      %569 = vmatprep.subr.mxu0 0.0
      %570 = vmatpush1.msra.mxu0 0.0
      %571 = vmatprep.subr.mxu0 0.0
      %572 = vmatpush1.msra.mxu0 0.0
      %573 = vmatprep.subr.mxu0 0.0
      %574 = vmatpush1.msra.mxu0 0.0
      %575 = vmatprep.subr.mxu0 0.0
      %576 = vmatpush1.msra.mxu0 0.0
      %577 = vmatprep.subr.mxu0 0.0
      %578 = vmatpush1.msra.mxu0 0.0
      %579 = vmatprep.subr.mxu0 0.0
      %580 = vmatpush1.msra.mxu0 0.0
      %581 = vmatprep.subr.mxu0 0.0
      %582 = vmatpush1.msra.mxu0 0.0
      %583 = vmatprep.subr.mxu0 0.0
      %584 = vmatpush1.msra.mxu0 0.0
      %585 = vmatprep.subr.mxu0 0.0
      %586 = vmatpush1.msra.mxu0 0.0
      %587 = vmatprep.subr.mxu0 0.0
      %588 = vmatpush1.msra.mxu0 0.0
      %589 = vmatprep.subr.mxu0 0.0
      %590 = vmatpush1.msra.mxu0 0.0
      %591 = vmatprep.subr.mxu0 0.0
      %592 = vmatpush1.msra.mxu0 0.0
      %593 = vmatprep.subr.mxu0 0.0
      %594 = vmatpush1.msra.mxu0 0.0
      %595 = vmatprep.subr.mxu0 0.0
      %596 = vmatpush1.msra.mxu0 0.0
      %597 = vmatprep.subr.mxu0 0.0
      %598 = vmatpush1.msra.mxu0 0.0
      %599 = vmatprep.subr.mxu0 0.0
      %600 = vmatpush1.msra.mxu0 0.0
      %601 = vmatprep.subr.mxu0 0.0
      %602 = vmatpush1.msra.mxu0 0.0
      %603 = vmatprep.subr.mxu0 0.0
      %604 = vmatpush1.msra.mxu0 0.0
      %605 = vmatprep.mubr.f32.mxu0 0.0
      %606 = vmatmul.mubr.f32.gmra.mrb[0].mxu0 %v539
      %v607 = vpop.f32.mrb[0].mxu0
      %v608 = vadd.f32 0.0, %v607
      %v609 = vpop.f32.mrb[0].mxu0
      %610 = vdwg.mxu0
      %v611 = vrcp.pop %v536
      %v612 = vmul.f32 %v608, %v611
      %v613 = vld [vmem:[%s4] sm:$0xff]
      %v614 = vld [vmem:[%s4 + $0x8] sm:$0xff]
      %v615 = vld [vmem:[%s4 + $0x10] sm:$0xff]
      %v616 = vld [vmem:[%s4 + $0x18] sm:$0xff]
      %v617 = vld [vmem:[%s5] sm:$0x1]
      %vm618 = vcmask 261120
      %v620 = vsel %vm618, %v612, 0
      %622 = vmatprep.subr.mxu0 0.0
      %623 = vmatpush1.msra.mxu0 %v613
      %624 = vmatprep.subr.mxu0 0.0
      %625 = vmatpush1.msra.mxu0 %v614
      %626 = vmatprep.subr.mxu0 0.0
      %627 = vmatpush1.msra.mxu0 %v615
      %628 = vmatprep.subr.mxu0 0.0
      %629 = vmatpush1.msra.mxu0 %v616
      %630 = vmatprep.subr.mxu0 0.0
      %631 = vmatpush1.msra.mxu0 0.0
      %632 = vmatprep.subr.mxu0 0.0
      %633 = vmatpush1.msra.mxu0 0.0
      %634 = vmatprep.subr.mxu0 0.0
      %635 = vmatpush1.msra.mxu0 0.0
      %636 = vmatprep.subr.mxu0 0.0
      %637 = vmatpush1.msra.mxu0 0.0
      %638 = vmatprep.subr.mxu0 0.0
      %639 = vmatpush1.msra.mxu0 0.0
      %640 = vmatprep.subr.mxu0 0.0
      %641 = vmatpush1.msra.mxu0 0.0
      %642 = vmatprep.subr.mxu0 0.0
      %643 = vmatpush1.msra.mxu0 0.0
      %644 = vmatprep.subr.mxu0 0.0
      %645 = vmatpush1.msra.mxu0 0.0
      %646 = vmatprep.subr.mxu0 0.0
      %647 = vmatpush1.msra.mxu0 0.0
      %648 = vmatprep.subr.mxu0 0.0
      %649 = vmatpush1.msra.mxu0 0.0
      %650 = vmatprep.subr.mxu0 0.0
      %651 = vmatpush1.msra.mxu0 0.0
      %652 = vmatprep.subr.mxu0 0.0
      %653 = vmatpush1.msra.mxu0 0.0
      %654 = vmatprep.subr.mxu0 0.0
      %655 = vmatpush1.msra.mxu0 0.0
      %656 = vmatprep.subr.mxu0 0.0
      %657 = vmatpush1.msra.mxu0 0.0
      %658 = vmatprep.subr.mxu0 0.0
      %659 = vmatpush1.msra.mxu0 0.0
      %660 = vmatprep.subr.mxu0 0.0
      %661 = vmatpush1.msra.mxu0 0.0
      %662 = vmatprep.subr.mxu0 0.0
      %663 = vmatpush1.msra.mxu0 0.0
      %664 = vmatprep.subr.mxu0 0.0
      %665 = vmatpush1.msra.mxu0 0.0
      %666 = vmatprep.subr.mxu0 0.0
      %667 = vmatpush1.msra.mxu0 0.0
      %668 = vmatprep.subr.mxu0 0.0
      %669 = vmatpush1.msra.mxu0 0.0
      %670 = vmatprep.subr.mxu0 0.0
      %671 = vmatpush1.msra.mxu0 0.0
      %672 = vmatprep.subr.mxu0 0.0
      %673 = vmatpush1.msra.mxu0 0.0
      %674 = vmatprep.subr.mxu0 0.0
      %675 = vmatpush1.msra.mxu0 0.0
      %676 = vmatprep.subr.mxu0 0.0
      %677 = vmatpush1.msra.mxu0 0.0
      %678 = vmatprep.subr.mxu0 0.0
      %679 = vmatpush1.msra.mxu0 0.0
      %680 = vmatprep.subr.mxu0 0.0
      %681 = vmatpush1.msra.mxu0 0.0
      %682 = vmatprep.subr.mxu0 0.0
      %683 = vmatpush1.msra.mxu0 0.0
      %684 = vmatprep.subr.mxu0 0.0
      %685 = vmatpush1.msra.mxu0 0.0
      %686 = vmatprep.mubr.f32.mxu0 0.0
      %687 = vmatmul.mubr.f32.gmra.mrb[0].mxu0 %v620
      %v688 = vpop.f32.mrb[0].mxu0
      %v689 = vadd.f32 %v617, %v688
      %v690 = vpop.f32.mrb[0].mxu0
      %691 = vdwg.mxu0
      // Predicated region
      $region53: #{forward_core.3} parent=47 // pred_check
        %p692 = pneg %p421
      $region54: #{forward_core.3} parent=47 // pred_check_branch
        %694 = sbr.rel (%p692) target = $region56
      $region55: #{forward_core.3} parent=47 // pred_region
        %vm695 = vcmask 57344
        %696 = vst.msk [vmem:[#allocation2] sm:$0x1] %vm695, %v689
        %697 = vst.msk [vmem:[%s418] sm:$0x1] %vm695, %v420
      $region56: #{forward_core.3} parent=47 // pred_fallthru
        _
      // Predicated region
      $region57: #{forward_core.3} parent=47 // pred_check
        %p698 = pneg %p507
      $region58: #{forward_core.3} parent=47 // pred_check_branch
        %700 = sbr.rel (%p698) target = $region60
      $region59: #{forward_core.3} parent=47 // pred_region
        %v701 = vlaneseq
        %v702 = vshrl.u32 %v701, 7
        %vm703 = vcmp.eq.s32.totalorder %v702, %v420
        %v704 = vld [vmem:[#allocation2] sm:$0x1]
        %v706 = vlaneseq
        %v707 = vshrl.u32 %v706, 7
        %v708 = vsub.s32 0, %v707
        %v709 = vrot.slane %v704, %v708
        %v711 = vsel %vm703, %v709, 0.0
        %v712 = vsel %vm429, %v711, 0.0
        %713 = vadd.xlane.f32.xlu0 %v712
        %v714 = vpop.xlane.xlu0 %713
        %v715 = vld [vmem:[%s6] sm:$0xff]
        %v716 = vadd.f32 %v714, %v715
        %v717 = vlaneseq
        %v718 = vshrl.u32 %v717, 7
        %v719 = vsub.s32 0, %v718
        %v720 = vrot.slane %v689, %v719
        %v721 = vadd.f32 %v716, %v720
        %v722 = vsel %vm429, %v721, -inf
        %v723 = vrot.slane %v722, 4
        %v724 = vmax.f32 %v722, %v723
        %v725 = vrot.slane %v724, 2
        %v726 = vmax.f32 %v724, %v725
        %v727 = vrot.slane %v726, 1
        %v728 = vmax.f32 %v726, %v727
        %vm729 = vcmp.eq.f32.partialorder %v721, %v728
        %v730 = vsel %vm729, %v702, 8
        %v731 = vsel %vm429, %v730, 2147483647
        %v732 = vrot.slane %v731, 4
        %vm733 = vcmp.lt.s32.totalorder %v731, %v732
        %v734 = vsel %vm733, %v731, %v732
        %v735 = vrot.slane %v734, 2
        %vm736 = vcmp.lt.s32.totalorder %v734, %v735
        %v737 = vsel %vm736, %v734, %v735
        %v738 = vrot.slane %v737, 1
        %vm739 = vcmp.lt.s32.totalorder %v737, %v738
        %v740 = vsel %vm739, %v737, %v738
        %vm741 = vcmask 57344
        %742 = vst.msk [vmem:[#allocation2] sm:$0x1] %vm741, %v728
        %743 = vst.msk [vmem:[%s418] sm:$0x1] %vm741, %v740
      $region60: #{forward_core.3} parent=47 // pred_fallthru
        _
      %v744 = vld [vmem:[#allocation2] sm:$0x1]
      %vm745 = vcmask 57344
      %v746 = vsel %vm745, %v744, -inf
      %747 = vmax.xlane.f32.xlu0 %v746
      %v748 = vpop.xlane.xlu0 %747
      %v749 = vsub.f32 %v744, %v748
      %v750 = vmul.f32 %v749, 1.442695
      %v751 = vpow.pop %v750
      %v752 = vsel %vm745, %v751, 0.0
      %753 = vadd.xlane.f32.xlu0 %v752
      %v754 = vpop.xlane.xlu0 %753
      %v755 = vrcp.pop %v754
      %v756 = vmul.f32 %v751, %v755
      %757 = vst.msk [vmem:[%s411] sm:$0x1] %vm745, %v756
      %vm758 = vcmp.eq.f32.partialorder %v744, %v748
      %v759 = vsel %vm758, %v420, 8
      %v760 = vsel %vm745, %v759, 2147483647
      %v761 = vand.u32 %v760, 65535
      %v762 = vshra.s32 %v760, 16
      %v763 = vcvt.s32.f32 %v761
      %v764 = vcvt.s32.f32 %v762
      %765 = vmin.xlane.f32.xlu0 %v764
      %v766 = vpop.xlane.xlu0 %765
      %vm767 = vcmp.eq.f32.partialorder %v764, %v766
      %v768 = vsel %vm767, %v763, inf
      %769 = vmin.xlane.f32.xlu0 %v768
      %v770 = vpop.xlane.xlu0 %769
      %v771 = vcvt.f32.s32 %v770
      %v772 = vcvt.f32.s32 %v766
      %v773 = vshll.u32 %v772, 16
      %v774 = vadd.s32 %v773, %v771
      %vm775 = vcmp.eq.s32.totalorder %v420, %v774
      %v776 = vsel %vm775, 1, 0
      %v777 = vcvt.s32.f32 %v776
      %778 = vst.msk [vmem:[#allocation3] sm:$0x1] %vm745, %v777
      %p779 = scmp.lt.s32.totalorder %s24, 1
      %s780 = scalar_select %p779, %s24, 1
      %p781 = scmp.lt.s32.totalorder %s25, 4
      %s782 = scalar_select %p781, %s25, 4
      %s783 = smul.addr %s780, 5
      %s784 = sadd.s32 %s782, %s783
      %s785 = scalar_lea.vmem %s7, %s784
      %p786 = scmp.lt.s32.totalorder %s24, 1
      %s787 = scalar_select %p786, %s24, 1
      %p788 = scmp.lt.s32.totalorder %s25, 4
      %s789 = scalar_select %p788, %s25, 4
      %s790 = smul.addr %s787, 5
      %s791 = sadd.s32 %s789, %s790
      %s792 = scalar_lea.vmem %s8, %s791
      // Predicated region
      $region61: #{forward_core.3} parent=47 // pred_check
        %p793 = pneg %p220
      $region62: #{forward_core.3} parent=47 // pred_check_branch
        %795 = sbr.rel (%p793) target = $region64
      $region63: #{forward_core.3} parent=47 // pred_region
        _
      $region64: #{forward_core.3} parent=47 // pred_fallthru
        _
      // Predicated region
      $region65: #{forward_core.3} parent=47 // pred_check
        %p796 = pneg %p248
      $region66: #{forward_core.3} parent=47 // pred_check_branch
        %798 = sbr.rel (%p796) target = $region68
      $region67: #{forward_core.3} parent=47 // pred_region
        _
      $region68: #{forward_core.3} parent=47 // pred_fallthru
        _
    $region48: #{forward_core.3} parent=5 // pred_fallthru
      _
    %p799 = scmp.le.s32.totalorder 2, %s15
    // Predicated region
    $region69: #{forward_core.3} parent=5 // pred_check
      %p800 = pneg %p799
    $region70: #{forward_core.3} parent=5 // pred_check_branch
      %802 = sbr.rel (%p800) target = $region72
    $region71: #{forward_core.3} parent=5 // pred_region
      %s803 = ssub.s32 %s15, 2
      // Predicated region
      $region73: #{forward_core.3} parent=71 // pred_check
        %p804 = pneg %p226
      $region74: #{forward_core.3} parent=71 // pred_check_branch
        %806 = sbr.rel (%p804) target = $region76
      $region75: #{forward_core.3} parent=71 // pred_region
        %p807 = scmp.lt.s32.totalorder %s26, 1
        %s808 = scalar_select %p807, %s26, 1
        %p809 = scmp.lt.s32.totalorder %s27, 4
        %s810 = scalar_select %p809, %s27, 4
        %s811 = smul.addr %s808, 5
        %s812 = sadd.s32 %s810, %s811
        %s813 = scalar_lea.vmem %s7, %s812
      $region76: #{forward_core.3} parent=71 // pred_fallthru
        _
      // Predicated region
      $region77: #{forward_core.3} parent=71 // pred_check
        %p814 = pneg %p254
      $region78: #{forward_core.3} parent=71 // pred_check_branch
        %816 = sbr.rel (%p814) target = $region80
      $region79: #{forward_core.3} parent=71 // pred_region
        %p817 = scmp.lt.s32.totalorder %s26, 1
        %s818 = scalar_select %p817, %s26, 1
        %p819 = scmp.lt.s32.totalorder %s27, 4
        %s820 = scalar_select %p819, %s27, 4
        %s821 = smul.addr %s818, 5
        %s822 = sadd.s32 %s820, %s821
        %s823 = scalar_lea.vmem %s8, %s822
      $region80: #{forward_core.3} parent=71 // pred_fallthru
        _
    $region72: #{forward_core.3} parent=5 // pred_fallthru
      _
  $region6: #{forward_core.3} parent=0 // loop_footer
    %s19 = sadd.s32 1, %s15
  $region7: #{forward_core.3} parent=0 // loop_footer_branch
    %14 = sbr.rel target = $region3
  $region8: #{forward_core.3} parent=0 // loop_exit
    _

</llo_original>
